<compile_context>
chip_gen: v7x
topology: tpu7x:2x2x1
jax: 0.10.0
libtpu: 0.0.40
codegen_flags: <defaults>
</compile_context>

<pallas_src>
from functools import partial

import jax
import jax.numpy as jnp
from jax import lax
from jax.experimental import pallas as pl
from jax.experimental.pallas import tpu as pltpu

EPS = 1e-6
NEG_BIG = -1e30  # stands in for -inf on padded class lanes


def _round_up(n, m):
    return ((n + m - 1) // m) * m


def _choose_batch_tile(n):
    # >=256 rows: fixed 256-row tile (MXU-friendly on v6e/v7x, ~6-8 MiB of
    # double-buffered VMEM at D=1024 -> safe inside v7x's 64 MiB).
    if n >= 256:
        return 256
    # tiny batches: one ragged-free tile, padded to the bf16 16-row sublane pack.
    return _round_up(max(n, 16), 16)


# ----------------------------------------------------------------------------- #
# Fused Pallas kernel: forward + softmax + LRP backward for one batch tile.
# ----------------------------------------------------------------------------- #
def lrp_fused_kernel(x_ref, w1t_ref, b1_ref, w2t_ref, b2_ref, w1_ref, w2_ref,
                     prob_ref, rel_h1_ref, rel_x_ref, *, n_cls):
    x = x_ref[...]                       # (TM, D)   f32
    w1t = w1t_ref[...]                   # (D,  H)   bf16  (forward, pre-transposed)
    w2t = w2t_ref[...]                   # (H, CP)   bf16  (forward, pre-transposed)
    b1 = b1_ref[...]                     # (1,  H)   f32
    b2 = b2_ref[...]                     # (1, CP)   f32

    # -------- forward pass (MXU, bf16 operands, f32 accumulation) -------------
    z1 = jnp.dot(x.astype(jnp.bfloat16), w1t,
                 preferred_element_type=jnp.float32) + b1              # (TM, H)
    h1 = jnp.maximum(z1, 0.0)                                          # ReLU
    z2 = jnp.dot(h1.astype(jnp.bfloat16), w2t,
                 preferred_element_type=jnp.float32) + b2              # (TM, CP)

    # -------- relevance init: softmax over the real (unpadded) classes --------
    col = lax.broadcasted_iota(jnp.int32, z2.shape, 1)
    valid = col < n_cls
    z2m = jnp.where(valid, z2, NEG_BIG)
    m = jnp.max(z2m, axis=-1, keepdims=True)
    e = jnp.exp(z2m - m)                           # padded lanes -> exp(-1e30) == 0
    prob = e / jnp.sum(e, axis=-1, keepdims=True)  # exact divide (sums to 1)
    prob = jnp.where(valid, prob, 0.0)
    prob_ref[...] = prob

    # -------- LRP epsilon rule, Linear2 (reuse forward z2) ---------------------
    z2e = z2 + jnp.where(z2 >= 0.0, EPS, -EPS)     # folded eps*sign(z)
    s2 = jnp.where(valid, prob / z2e, 0.0)         # exact divide, padded lanes 0
    # backward dot in f32 (K = CP = 128, cost negligible; preserves LRP fidelity)
    c2 = jnp.dot(s2, w2_ref[...], preferred_element_type=jnp.float32)  # (TM, H)
    r_h1 = h1 * c2
    rel_h1_ref[...] = r_h1

    # ReLU layer: relevance passes through unchanged.

    # -------- LRP epsilon rule, Linear1 (reuse forward z1) ---------------------
    z1e = z1 + jnp.where(z1 >= 0.0, EPS, -EPS)
    s1 = r_h1 / z1e
    c1 = jnp.dot(s1, w1_ref[...], preferred_element_type=jnp.float32)  # (TM, D)
    rel_x_ref[...] = x * c1


def lrp_fused(x, w1t, b1, w2t, b2, w1, w2, *, tm, n_cls):
    """Row-tiled pallas_call: weights resident in VMEM, batch pipelined."""
    np_, d = x.shape
    hidden = w1t.shape[1]
    cp = w2t.shape[1]
    grid = (np_ // tm,)

    def row_spec(cols):
        return pl.BlockSpec((tm, cols), lambda i: (i, 0))

    def const_spec(arr):
        # full-array block, constant index -> fetched once, resident across steps
        return pl.BlockSpec(arr.shape, lambda i: (0, 0))

    return pl.pallas_call(
        partial(lrp_fused_kernel, n_cls=n_cls),
        grid=grid,
        in_specs=[row_spec(d), const_spec(w1t), const_spec(b1),
                  const_spec(w2t), const_spec(b2),
                  const_spec(w1), const_spec(w2)],
        out_specs=(row_spec(cp), row_spec(hidden), row_spec(d)),
        out_shape=(
            jax.ShapeDtypeStruct((np_, cp), jnp.float32),      # softmax relevance
            jax.ShapeDtypeStruct((np_, hidden), jnp.float32),  # relevance at h1
            jax.ShapeDtypeStruct((np_, d), jnp.float32),       # relevance at input
        ),
        compiler_params=pltpu.CompilerParams(
            dimension_semantics=("parallel",),                 # megacore on v7x
            vmem_limit_bytes=48 * 1024 * 1024),                # v7x-safe, > v5e 16 MiB default
    )(x, w1t, b1, w2t, b2, w1, w2)


# ----------------------------------------------------------------------------- #
# LRPModel equivalent
# ----------------------------------------------------------------------------- #
class LRPModelPallas:
    """Pallas re-implementation of LRPModel.forward for the synthetic model
    [Flatten, Linear(d_in, hidden), ReLU, Linear(hidden, n_cls)]."""

    CLS_LANES = 128  # lane-dense padding for the class dimension

    def __init__(self, d_in, hidden, n_cls, key):
        k1, k2, k3, k4 = jax.random.split(key, 4)
        self.n_cls = n_cls
        cp = _round_up(max(n_cls, self.CLS_LANES), 128)

        w1 = jax.random.normal(k1, (hidden, d_in), jnp.float32) * (2.0 / d_in) ** 0.5
        w2 = jax.random.normal(k3, (n_cls, hidden), jnp.float32) * (2.0 / hidden) ** 0.5
        w2p = jnp.zeros((cp, hidden), jnp.float32).at[:n_cls].set(w2)

        # Backward (LRP) dots use f32 weights in PyTorch (out, in) layout.
        self.w1_bwd = w1                                             # (hidden, d_in) f32
        self.w2_bwd = w2p                                            # (cp, hidden)   f32
        # Forward dots use bf16 weights pre-transposed to (in, out): no in-kernel
        # transpose / relayout on the per-tile critical path.
        self.w1t_fwd = jnp.transpose(w1).astype(jnp.bfloat16)        # (d_in, hidden)
        self.w2t_fwd = jnp.transpose(w2p).astype(jnp.bfloat16)       # (hidden, cp)

        self.b1 = jax.random.normal(k2, (1, hidden), jnp.float32) * 0.01
        self.b2p = jnp.zeros((1, cp), jnp.float32).at[:, :n_cls].set(
            jax.random.normal(k4, (1, n_cls), jnp.float32) * 0.01)

        self._relevance_scores = None

    @property
    def relevance_scores(self):
        if self._relevance_scores is None:
            raise RuntimeError(
                "Relevance scores first need to be calculated through forward(input)")
        return self._relevance_scores

    def forward(self, x, topk=-1):
        # TODO(synk): topk != -1 branch (torch.topk scatter) not implemented; the
        # reference default (topk=-1, use all classes) is reproduced exactly.
        N, C, H, W = x.shape
        D = C * H * W

        a_flat = x.reshape(N, D).astype(jnp.float32)     # Flatten output
        tm = _choose_batch_tile(N)
        NP = _round_up(N, tm)
        # Pad only when the batch is ragged w.r.t. the tile (no extra HBM
        # round-trip when N is already a tile multiple).
        a_in = a_flat if NP == N else jnp.pad(a_flat, ((0, NP - N), (0, 0)))

        prob_p, rel_h1_p, rel_x_p = lrp_fused(
            a_in, self.w1t_fwd, self.b1, self.w2t_fwd, self.b2p,
            self.w1_bwd, self.w2_bwd, tm=tm, n_cls=self.n_cls)

        prob = prob_p[:N, :self.n_cls]       # softmax relevance over real classes
        rel_h1 = rel_h1_p[:N]                # relevance after LRP-Linear2 / ReLU
        rel_flat = rel_x_p[:N]               # relevance after LRP-Linear1
        rel_img = rel_flat.reshape(N, C, H, W)   # LRP-Flatten (a = ones -> no-op mult)

        # Same structure as the PyTorch relevance_list[::-1]
        self._relevance_scores = [rel_img, rel_flat, rel_h1, rel_h1, prob]
        return rel_img


# ----------------------------------------------------------------------------- #
if __name__ == "__main__":
    key = jax.random.PRNGKey(0)
    k_x, k_p = jax.random.split(key)

    N, C, H, W = 2, 4, 16, 16
    hidden, n_cls = 128, 10

    x = jax.random.normal(k_x, (N, C, H, W), jnp.float32)

    model = LRPModelPallas(d_in=C * H * W, hidden=hidden, n_cls=n_cls, key=k_p)
    rel = model.forward(x)
    rel = jax.block_until_ready(rel)

    assert rel.shape == (N, C, H, W)
    assert bool(jnp.all(jnp.isfinite(rel)))
    # relevance maps are finite per sample
    _ = jax.block_until_ready(jnp.sum(rel, axis=(1, 2, 3)))
    # softmax relevance sums to ~1 per sample (exact divide in-kernel)
    prob = model.relevance_scores[-1]
    assert bool(jnp.all(jnp.abs(jnp.sum(prob, axis=-1) - 1.0) < 1e-3))

    print("KERNEL_OK")
</pallas_src>

<mosaic_0001>
module attributes {stable_mosaic.version = 11 : i64} {
  func.func @lrp_fused_kernel(%arg0: i32, %arg1: memref<16x1024xf32, #tpu.memory_space<vmem>>, %arg2: memref<1024x128xbf16, #tpu.memory_space<vmem>>, %arg3: memref<1x128xf32, #tpu.memory_space<vmem>>, %arg4: memref<128x128xbf16, #tpu.memory_space<vmem>>, %arg5: memref<1x128xf32, #tpu.memory_space<vmem>>, %arg6: memref<128x1024xf32, #tpu.memory_space<vmem>>, %arg7: memref<128x128xf32, #tpu.memory_space<vmem>>, %arg8: memref<16x128xf32, #tpu.memory_space<vmem>>, %arg9: memref<16x128xf32, #tpu.memory_space<vmem>>, %arg10: memref<16x1024xf32, #tpu.memory_space<vmem>>) attributes {dimension_semantics = [#tpu.dimension_semantics<parallel>], iteration_bounds = array<i64: 1>, scalar_prefetch = 0 : i64, scratch_operands = 0 : i64, tpu.core_type = #tpu.core_type<tc>, window_params = [{transform_indices = @transform_0, window_bounds = array<i64: 16, 1024>}, {pipeline_mode = #tpu.pipeline_mode<synchronous>, transform_indices = @transform_1, window_bounds = array<i64: 1024, 128>}, {pipeline_mode = #tpu.pipeline_mode<synchronous>, transform_indices = @transform_2, window_bounds = array<i64: 1, 128>}, {pipeline_mode = #tpu.pipeline_mode<synchronous>, transform_indices = @transform_3, window_bounds = array<i64: 128, 128>}, {pipeline_mode = #tpu.pipeline_mode<synchronous>, transform_indices = @transform_4, window_bounds = array<i64: 1, 128>}, {pipeline_mode = #tpu.pipeline_mode<synchronous>, transform_indices = @transform_5, window_bounds = array<i64: 128, 1024>}, {pipeline_mode = #tpu.pipeline_mode<synchronous>, transform_indices = @transform_6, window_bounds = array<i64: 128, 128>}, {transform_indices = @transform_7, window_bounds = array<i64: 16, 128>}, {transform_indices = @transform_8, window_bounds = array<i64: 16, 128>}, {transform_indices = @transform_9, window_bounds = array<i64: 16, 1024>}]} {
    %c0 = arith.constant 0 : index
    %c0_0 = arith.constant 0 : index
    %0 = vector.load %arg1[%c0, %c0_0] : memref<16x1024xf32, #tpu.memory_space<vmem>>, vector<16x1024xf32>
    %c0_1 = arith.constant 0 : index
    %c0_2 = arith.constant 0 : index
    %1 = vector.load %arg2[%c0_1, %c0_2] : memref<1024x128xbf16, #tpu.memory_space<vmem>>, vector<1024x128xbf16>
    %c0_3 = arith.constant 0 : index
    %c0_4 = arith.constant 0 : index
    %2 = vector.load %arg4[%c0_3, %c0_4] : memref<128x128xbf16, #tpu.memory_space<vmem>>, vector<128x128xbf16>
    %c0_5 = arith.constant 0 : index
    %c0_6 = arith.constant 0 : index
    %3 = vector.load %arg3[%c0_5, %c0_6] : memref<1x128xf32, #tpu.memory_space<vmem>>, vector<1x128xf32>
    %c0_7 = arith.constant 0 : index
    %c0_8 = arith.constant 0 : index
    %4 = vector.load %arg5[%c0_7, %c0_8] : memref<1x128xf32, #tpu.memory_space<vmem>>, vector<1x128xf32>
    %5 = arith.truncf %0 : vector<16x1024xf32> to vector<16x1024xbf16>
    %cst = arith.constant dense<0.000000e+00> : vector<16x128xf32>
    %6 = tpu.matmul %5, %1, %cst {dimension_numbers = #tpu.dot_dimension_numbers<[1], [0], [0], [1], [0, 0, 1, 1], [], []>} : vector<16x1024xbf16>, vector<1024x128xbf16>, vector<16x128xf32> -> vector<16x128xf32>
    %7 = vector.broadcast %3 : vector<1x128xf32> to vector<16x128xf32>
    %8 = arith.addf %6, %7 : vector<16x128xf32>
    %cst_9 = arith.constant 0.000000e+00 : f32
    %9 = vector.broadcast %cst_9 : f32 to vector<16x128xf32>
    %10 = arith.maximumf %8, %9 : vector<16x128xf32>
    %11 = arith.truncf %10 : vector<16x128xf32> to vector<16x128xbf16>
    %cst_10 = arith.constant dense<0.000000e+00> : vector<16x128xf32>
    %12 = tpu.matmul %11, %2, %cst_10 {dimension_numbers = #tpu.dot_dimension_numbers<[1], [0], [0], [1], [0, 0, 1, 1], [], []>} : vector<16x128xbf16>, vector<128x128xbf16>, vector<16x128xf32> -> vector<16x128xf32>
    %13 = vector.broadcast %4 : vector<1x128xf32> to vector<16x128xf32>
    %14 = arith.addf %12, %13 : vector<16x128xf32>
    %15 = tpu.iota {dimensions = array<i32: 1>} : vector<16x128xi32>
    %c10_i32 = arith.constant 10 : i32
    %16 = vector.broadcast %c10_i32 : i32 to vector<16x128xi32>
    %17 = arith.cmpi slt, %15, %16 : vector<16x128xi32>
    %cst_11 = arith.constant -1.000000e+30 : f32
    %18 = vector.broadcast %cst_11 : f32 to vector<16x128xf32>
    %19 = arith.select %17, %14, %18 : vector<16x128xi1>, vector<16x128xf32>
    %cst_12 = arith.constant dense<0xFF800000> : vector<16xf32>
    %20 = vector.multi_reduction <maximumf>, %19, %cst_12 [1] : vector<16x128xf32> to vector<16xf32>
    %21 = vector.shape_cast %20 : vector<16xf32> to vector<16x1xf32>
    %22 = vector.broadcast %21 : vector<16x1xf32> to vector<16x128xf32>
    %23 = arith.subf %19, %22 : vector<16x128xf32>
    %24 = math.exp %23 : vector<16x128xf32>
    %cst_13 = arith.constant dense<0.000000e+00> : vector<16xf32>
    %25 = vector.multi_reduction <add>, %24, %cst_13 [1] : vector<16x128xf32> to vector<16xf32>
    %26 = vector.shape_cast %25 : vector<16xf32> to vector<16x1xf32>
    %27 = vector.broadcast %26 : vector<16x1xf32> to vector<16x128xf32>
    %28 = arith.divf %24, %27 : vector<16x128xf32>
    %cst_14 = arith.constant 0.000000e+00 : f32
    %29 = vector.broadcast %cst_14 : f32 to vector<16x128xf32>
    %30 = arith.select %17, %28, %29 : vector<16x128xi1>, vector<16x128xf32>
    %c0_15 = arith.constant 0 : index
    %c0_16 = arith.constant 0 : index
    %31 = vector.load %arg8[%c0_15, %c0_16] : memref<16x128xf32, #tpu.memory_space<vmem>>, vector<16x128xf32>
    tpu.vector_store %arg8[%c0_15, %c0_16], %30 {strides = array<i32>} : memref<16x128xf32, #tpu.memory_space<vmem>>, vector<16x128xf32>,
    %cst_17 = arith.constant 0.000000e+00 : f32
    %32 = vector.broadcast %cst_17 : f32 to vector<16x128xf32>
    %33 = arith.cmpf oge, %14, %32 : vector<16x128xf32>
    %cst_18 = arith.constant 9.99999997E-7 : f32
    %cst_19 = arith.constant -9.99999997E-7 : f32
    %34 = vector.broadcast %cst_18 : f32 to vector<16x128xf32>
    %35 = vector.broadcast %cst_19 : f32 to vector<16x128xf32>
    %36 = arith.select %33, %34, %35 : vector<16x128xi1>, vector<16x128xf32>
    %37 = arith.addf %14, %36 : vector<16x128xf32>
    %38 = arith.divf %30, %37 : vector<16x128xf32>
    %cst_20 = arith.constant 0.000000e+00 : f32
    %39 = vector.broadcast %cst_20 : f32 to vector<16x128xf32>
    %40 = arith.select %17, %38, %39 : vector<16x128xi1>, vector<16x128xf32>
    %c0_21 = arith.constant 0 : index
    %c0_22 = arith.constant 0 : index
    %41 = vector.load %arg7[%c0_21, %c0_22] : memref<128x128xf32, #tpu.memory_space<vmem>>, vector<128x128xf32>
    %cst_23 = arith.constant dense<0.000000e+00> : vector<16x128xf32>
    %42 = tpu.matmul %40, %41, %cst_23 {dimension_numbers = #tpu.dot_dimension_numbers<[1], [0], [0], [1], [0, 0, 1, 1], [], []>} : vector<16x128xf32>, vector<128x128xf32>, vector<16x128xf32> -> vector<16x128xf32>
    %43 = arith.mulf %10, %42 : vector<16x128xf32>
    %c0_24 = arith.constant 0 : index
    %c0_25 = arith.constant 0 : index
    %44 = vector.load %arg9[%c0_24, %c0_25] : memref<16x128xf32, #tpu.memory_space<vmem>>, vector<16x128xf32>
    tpu.vector_store %arg9[%c0_24, %c0_25], %43 {strides = array<i32>} : memref<16x128xf32, #tpu.memory_space<vmem>>, vector<16x128xf32>,
    %cst_26 = arith.constant 0.000000e+00 : f32
    %45 = vector.broadcast %cst_26 : f32 to vector<16x128xf32>
    %46 = arith.cmpf oge, %8, %45 : vector<16x128xf32>
    %cst_27 = arith.constant 9.99999997E-7 : f32
    %cst_28 = arith.constant -9.99999997E-7 : f32
    %47 = vector.broadcast %cst_27 : f32 to vector<16x128xf32>
    %48 = vector.broadcast %cst_28 : f32 to vector<16x128xf32>
    %49 = arith.select %46, %47, %48 : vector<16x128xi1>, vector<16x128xf32>
    %50 = arith.addf %8, %49 : vector<16x128xf32>
    %51 = arith.divf %43, %50 : vector<16x128xf32>
    %c0_29 = arith.constant 0 : index
    %c0_30 = arith.constant 0 : index
    %52 = vector.load %arg6[%c0_29, %c0_30] : memref<128x1024xf32, #tpu.memory_space<vmem>>, vector<128x1024xf32>
    %cst_31 = arith.constant dense<0.000000e+00> : vector<16x1024xf32>
    %53 = tpu.matmul %51, %52, %cst_31 {dimension_numbers = #tpu.dot_dimension_numbers<[1], [0], [0], [1], [0, 0, 1, 1], [], []>} : vector<16x128xf32>, vector<128x1024xf32>, vector<16x1024xf32> -> vector<16x1024xf32>
    %54 = arith.mulf %0, %53 : vector<16x1024xf32>
    %c0_32 = arith.constant 0 : index
    %c0_33 = arith.constant 0 : index
    %55 = vector.load %arg10[%c0_32, %c0_33] : memref<16x1024xf32, #tpu.memory_space<vmem>>, vector<16x1024xf32>
    tpu.vector_store %arg10[%c0_32, %c0_33], %54 {strides = array<i32>} : memref<16x1024xf32, #tpu.memory_space<vmem>>, vector<16x1024xf32>,
    return
  }
  func.func @transform_0(%arg0: i32) -> (i32, i32) {
    %c0_i32 = arith.constant 0 : i32
    %c0_i32_0 = arith.constant 0 : i32
    return %arg0, %c0_i32 : i32, i32
  }
  func.func @transform_1(%arg0: i32) -> (i32, i32) {
    %c0_i32 = arith.constant 0 : i32
    %c0_i32_0 = arith.constant 0 : i32
    %c0_i32_1 = arith.constant 0 : i32
    return %c0_i32, %c0_i32_0 : i32, i32
  }
  func.func @transform_2(%arg0: i32) -> (i32, i32) {
    %c0_i32 = arith.constant 0 : i32
    %c0_i32_0 = arith.constant 0 : i32
    %c0_i32_1 = arith.constant 0 : i32
    return %c0_i32, %c0_i32_0 : i32, i32
  }
  func.func @transform_3(%arg0: i32) -> (i32, i32) {
    %c0_i32 = arith.constant 0 : i32
    %c0_i32_0 = arith.constant 0 : i32
    %c0_i32_1 = arith.constant 0 : i32
    return %c0_i32, %c0_i32_0 : i32, i32
  }
  func.func @transform_4(%arg0: i32) -> (i32, i32) {
    %c0_i32 = arith.constant 0 : i32
    %c0_i32_0 = arith.constant 0 : i32
    %c0_i32_1 = arith.constant 0 : i32
    return %c0_i32, %c0_i32_0 : i32, i32
  }
  func.func @transform_5(%arg0: i32) -> (i32, i32) {
    %c0_i32 = arith.constant 0 : i32
    %c0_i32_0 = arith.constant 0 : i32
    %c0_i32_1 = arith.constant 0 : i32
    return %c0_i32, %c0_i32_0 : i32, i32
  }
  func.func @transform_6(%arg0: i32) -> (i32, i32) {
    %c0_i32 = arith.constant 0 : i32
    %c0_i32_0 = arith.constant 0 : i32
    %c0_i32_1 = arith.constant 0 : i32
    return %c0_i32, %c0_i32_0 : i32, i32
  }
  func.func @transform_7(%arg0: i32) -> (i32, i32) {
    %c0_i32 = arith.constant 0 : i32
    %c0_i32_0 = arith.constant 0 : i32
    return %arg0, %c0_i32 : i32, i32
  }
  func.func @transform_8(%arg0: i32) -> (i32, i32) {
    %c0_i32 = arith.constant 0 : i32
    %c0_i32_0 = arith.constant 0 : i32
    return %arg0, %c0_i32 : i32, i32
  }
  func.func @transform_9(%arg0: i32) -> (i32, i32) {
    %c0_i32 = arith.constant 0 : i32
    %c0_i32_0 = arith.constant 0 : i32
    return %arg0, %c0_i32 : i32, i32
  }
}

</mosaic_0001>

<llo_original>
// kernel: tpu_custom_call.1
$region0: #{tpu_custom_call.1}
  #allocation0 [shape = 'u32[]', space=smem, size = 0x4, offset = 0x4, fixed_abs, tag = 'smem constant byte address 0x4 - core index']
  #allocation1 [shape = 'u32[144,128]{1,0:T(1,128)}', space=vmem, size = 0x12000, scoped, tag = 'internal scratch']
  %s0 = inlined_call_operand.hbm [shape: f32[16,1024], index: 0, kind: input, shape index: {}]
  %s1 = inlined_call_operand.hbm [shape: bf16[1024,128], index: 1, kind: input, shape index: {}]
  %s2 = inlined_call_operand.vmem [shape: f32[1,128], index: 2, kind: input, shape index: {}]
  %s3 = inlined_call_operand.hbm [shape: bf16[128,128], index: 3, kind: input, shape index: {}]
  %s4 = inlined_call_operand.vmem [shape: f32[1,128], index: 4, kind: input, shape index: {}]
  %s5 = inlined_call_operand.hbm [shape: f32[128,1024], index: 5, kind: input, shape index: {}]
  %s6 = inlined_call_operand.hbm [shape: f32[128,128], index: 6, kind: input, shape index: {}]
  %s7 = inlined_call_operand.hbm [shape: f32[16,128], index: 7, kind: output, shape index: {0}]
  %s8 = inlined_call_operand.hbm [shape: f32[16,128], index: 8, kind: output, shape index: {1}]
  %s9 = inlined_call_operand.hbm [shape: f32[16,1024], index: 9, kind: output, shape index: {2}]
  %10 = xla_tuple %s7, %s8, %s9
  %s11 = sld [smem:[#allocation0]]
  $region74: #{tpu_custom_call.1} parent=0
    _
  %s13 = ssub.s32 1, %s11
  %s14 = scalar_select 0, %s13, %s11
  $region1: #{tpu_custom_call.1} parent=0
    #allocation2 [shape = 'u8[65536]{0}', space=vmem, size = 0x10000, scoped, tag = 'input window, operand 0, single buffered']
    #allocation3 [shape = 's32[1]{0}', space=sflag, size = 0x4, scoped, tag = 'scoped memory for tpu_custom_call.1']
    #allocation4 [shape = 's32[1]{0}', space=sflag, size = 0x4, scoped, tag = 'scoped memory for tpu_custom_call.1']
    #allocation5 [shape = 'u8[262144]{0}', space=vmem, size = 0x40000, scoped, tag = 'input window, operand 1, single buffered']
    #allocation6 [shape = 's32[1]{0}', space=sflag, size = 0x4, scoped, tag = 'scoped memory for tpu_custom_call.1']
    #allocation7 [shape = 'u8[32768]{0}', space=vmem, size = 0x8000, scoped, tag = 'input window, operand 3, single buffered']
    #allocation8 [shape = 'u8[524288]{0}', space=vmem, size = 0x80000, scoped, tag = 'input window, operand 5, single buffered']
    #allocation9 [shape = 's32[1]{0}', space=sflag, size = 0x4, scoped, tag = 'scoped memory for tpu_custom_call.1']
    #allocation10 [shape = 'u8[65536]{0}', space=vmem, size = 0x10000, scoped, tag = 'input window, operand 6, single buffered']
    #allocation11 [shape = 'u8[8192]{0}', space=vmem, size = 0x2000, scoped, tag = 'output window, operand 0, single buffered']
    #allocation12 [shape = 'u8[8192]{0}', space=vmem, size = 0x2000, scoped, tag = 'output window, operand 1, single buffered']
    #allocation13 [shape = 's32[1]{0}', space=sflag, size = 0x4, scoped, tag = 'scoped memory for tpu_custom_call.1']
    #allocation14 [shape = 'u8[65536]{0}', space=vmem, size = 0x10000, scoped, tag = 'output window, operand 2, single buffered']
    %15 = vsyncpa [#allocation3], 0
    %16 = vsyncpa [#allocation6], 0
    %17 = vsyncpa [#allocation9], 0
    %18 = vsyncpa [#allocation4], 0
    %19 = vsyncpa [#allocation13], 0
    // Predicated region
    $region2: #{tpu_custom_call.1} parent=1 // pred_check
      _
    $region3: #{tpu_custom_call.1} parent=1 // pred_check_branch
      %21 = sbr.rel (0) target = $region5
    $region4: #{tpu_custom_call.1} parent=1 // pred_region
      %s23 = ssub.s32 2048, 2048
      %24 = vsyncadd [#allocation3], %s23
      %s25 = sshll.u32 [#allocation2], 4
      %s26 = int_to_ptr.vmem [resolvable:$true] %s25
      %31 = dma.hbm_to_vmem [thread:$0]  %s0, 2048, %s26, [#allocation3], 1024, 1024, 64
    $region5: #{tpu_custom_call.1} parent=1 // pred_fallthru
      _
    // Predicated region
    $region6: #{tpu_custom_call.1} parent=1 // pred_check
      _
    $region7: #{tpu_custom_call.1} parent=1 // pred_check_branch
      %33 = sbr.rel (0) target = $region9
    $region8: #{tpu_custom_call.1} parent=1 // pred_region
      %s35 = ssub.s32 8192, 8192
      %36 = vsyncadd [#allocation6], %s35
      %s37 = sshll.u32 [#allocation5], 4
      %s38 = int_to_ptr.vmem [resolvable:$true] %s37
      %43 = dma.hbm_to_vmem [thread:$0]  %s1, 8192, %s38, [#allocation6], 64, 64, 4
    $region9: #{tpu_custom_call.1} parent=1 // pred_fallthru
      _
    // Predicated region
    $region10: #{tpu_custom_call.1} parent=1 // pred_check
      _
    $region11: #{tpu_custom_call.1} parent=1 // pred_check_branch
      %45 = sbr.rel (0) target = $region13
    $region12: #{tpu_custom_call.1} parent=1 // pred_region
      _
    $region13: #{tpu_custom_call.1} parent=1 // pred_fallthru
      _
    // Predicated region
    $region14: #{tpu_custom_call.1} parent=1 // pred_check
      _
    $region15: #{tpu_custom_call.1} parent=1 // pred_check_branch
      %47 = sbr.rel (0) target = $region17
    $region16: #{tpu_custom_call.1} parent=1 // pred_region
      %s49 = ssub.s32 1024, 1024
      %50 = vsyncadd [#allocation6], %s49
      %s51 = sshll.u32 [#allocation7], 4
      %s52 = int_to_ptr.vmem [resolvable:$true] %s51
      %57 = dma.hbm_to_vmem [thread:$0]  %s3, 1024, %s52, [#allocation6], 64, 64, 4
    $region17: #{tpu_custom_call.1} parent=1 // pred_fallthru
      _
    // Predicated region
    $region18: #{tpu_custom_call.1} parent=1 // pred_check
      _
    $region19: #{tpu_custom_call.1} parent=1 // pred_check_branch
      %59 = sbr.rel (0) target = $region21
    $region20: #{tpu_custom_call.1} parent=1 // pred_region
      _
    $region21: #{tpu_custom_call.1} parent=1 // pred_fallthru
      _
    // Predicated region
    $region22: #{tpu_custom_call.1} parent=1 // pred_check
      _
    $region23: #{tpu_custom_call.1} parent=1 // pred_check_branch
      %61 = sbr.rel (0) target = $region25
    $region24: #{tpu_custom_call.1} parent=1 // pred_region
      %s63 = ssub.s32 16384, 16384
      %64 = vsyncadd [#allocation9], %s63
      %s65 = sshll.u32 [#allocation8], 4
      %s66 = int_to_ptr.vmem [resolvable:$true] %s65
      %71 = dma.hbm_to_vmem [thread:$0]  %s5, 16384, %s66, [#allocation9], 1024, 1024, 64
    $region25: #{tpu_custom_call.1} parent=1 // pred_fallthru
      _
    // Predicated region
    $region26: #{tpu_custom_call.1} parent=1 // pred_check
      _
    $region27: #{tpu_custom_call.1} parent=1 // pred_check_branch
      %73 = sbr.rel (0) target = $region29
    $region28: #{tpu_custom_call.1} parent=1 // pred_region
      %s75 = ssub.s32 2048, 2048
      %76 = vsyncadd [#allocation9], %s75
      %s77 = sshll.u32 [#allocation10], 4
      %s78 = int_to_ptr.vmem [resolvable:$true] %s77
      %83 = dma.hbm_to_vmem [thread:$0]  %s6, 2048, %s78, [#allocation9], 128, 128, 8
    $region29: #{tpu_custom_call.1} parent=1 // pred_fallthru
      _
    // Predicated region
    $region30: #{tpu_custom_call.1} parent=1 // pred_check
      _
    $region31: #{tpu_custom_call.1} parent=1 // pred_check_branch
      %85 = sbr.rel (0) target = $region33
    $region32: #{tpu_custom_call.1} parent=1 // pred_region
      %86 = dma.done [#allocation3], 2048
    $region33: #{tpu_custom_call.1} parent=1 // pred_fallthru
      _
    // Predicated region
    $region34: #{tpu_custom_call.1} parent=1 // pred_check
      _
    $region35: #{tpu_custom_call.1} parent=1 // pred_check_branch
      %88 = sbr.rel (0) target = $region37
    $region36: #{tpu_custom_call.1} parent=1 // pred_region
      %89 = dma.done [#allocation6], 8192
    $region37: #{tpu_custom_call.1} parent=1 // pred_fallthru
      _
    // Predicated region
    $region38: #{tpu_custom_call.1} parent=1 // pred_check
      _
    $region39: #{tpu_custom_call.1} parent=1 // pred_check_branch
      %91 = sbr.rel (0) target = $region41
    $region40: #{tpu_custom_call.1} parent=1 // pred_region
      %92 = dma.done [#allocation6], 1024
    $region41: #{tpu_custom_call.1} parent=1 // pred_fallthru
      _
    // Predicated region
    $region42: #{tpu_custom_call.1} parent=1 // pred_check
      _
    $region43: #{tpu_custom_call.1} parent=1 // pred_check_branch
      %94 = sbr.rel (0) target = $region45
    $region44: #{tpu_custom_call.1} parent=1 // pred_region
      %95 = dma.done [#allocation9], 16384
    $region45: #{tpu_custom_call.1} parent=1 // pred_fallthru
      _
    // Predicated region
    $region46: #{tpu_custom_call.1} parent=1 // pred_check
      _
    $region47: #{tpu_custom_call.1} parent=1 // pred_check_branch
      %97 = sbr.rel (0) target = $region49
    $region48: #{tpu_custom_call.1} parent=1 // pred_region
      %98 = dma.done [#allocation9], 2048
    $region49: #{tpu_custom_call.1} parent=1 // pred_fallthru
      _
    %v100 = vld [vmem:[#allocation2] sm:$0xff]
    %v101 = vld [vmem:[#allocation2 + $0x8] sm:$0xff]
    %v102 = vld [vmem:[#allocation2 + $0x10] sm:$0xff]
    %v103 = vld [vmem:[#allocation2 + $0x18] sm:$0xff]
    %v104 = vld [vmem:[#allocation2 + $0x20] sm:$0xff]
    %v105 = vld [vmem:[#allocation2 + $0x28] sm:$0xff]
    %v106 = vld [vmem:[#allocation2 + $0x30] sm:$0xff]
    %v107 = vld [vmem:[#allocation2 + $0x38] sm:$0xff]
    %v108 = vld [vmem:[#allocation2 + $0x40] sm:$0xff]
    %v109 = vld [vmem:[#allocation2 + $0x48] sm:$0xff]
    %v110 = vld [vmem:[#allocation2 + $0x50] sm:$0xff]
    %v111 = vld [vmem:[#allocation2 + $0x58] sm:$0xff]
    %v112 = vld [vmem:[#allocation2 + $0x60] sm:$0xff]
    %v113 = vld [vmem:[#allocation2 + $0x68] sm:$0xff]
    %v114 = vld [vmem:[#allocation2 + $0x70] sm:$0xff]
    %v115 = vld [vmem:[#allocation2 + $0x78] sm:$0xff]
    %v116 = vld [vmem:[#allocation5] sm:$0xf]
    %v117 = vld [vmem:[#allocation5 + $0x4] sm:$0xf]
    %v118 = vld [vmem:[#allocation5 + $0x8] sm:$0xf]
    %v119 = vld [vmem:[#allocation5 + $0xc] sm:$0xf]
    %v120 = vld [vmem:[#allocation5 + $0x10] sm:$0xf]
    %v121 = vld [vmem:[#allocation5 + $0x14] sm:$0xf]
    %v122 = vld [vmem:[#allocation5 + $0x18] sm:$0xf]
    %v123 = vld [vmem:[#allocation5 + $0x1c] sm:$0xf]
    %v124 = vld [vmem:[#allocation5 + $0x20] sm:$0xf]
    %v125 = vld [vmem:[#allocation5 + $0x24] sm:$0xf]
    %v126 = vld [vmem:[#allocation5 + $0x28] sm:$0xf]
    %v127 = vld [vmem:[#allocation5 + $0x2c] sm:$0xf]
    %v128 = vld [vmem:[#allocation5 + $0x30] sm:$0xf]
    %v129 = vld [vmem:[#allocation5 + $0x34] sm:$0xf]
    %v130 = vld [vmem:[#allocation5 + $0x38] sm:$0xf]
    %v131 = vld [vmem:[#allocation5 + $0x3c] sm:$0xf]
    %v132 = vld [vmem:[#allocation5 + $0x40] sm:$0xf]
    %v133 = vld [vmem:[#allocation5 + $0x44] sm:$0xf]
    %v134 = vld [vmem:[#allocation5 + $0x48] sm:$0xf]
    %v135 = vld [vmem:[#allocation5 + $0x4c] sm:$0xf]
    %v136 = vld [vmem:[#allocation5 + $0x50] sm:$0xf]
    %v137 = vld [vmem:[#allocation5 + $0x54] sm:$0xf]
    %v138 = vld [vmem:[#allocation5 + $0x58] sm:$0xf]
    %v139 = vld [vmem:[#allocation5 + $0x5c] sm:$0xf]
    %v140 = vld [vmem:[#allocation5 + $0x60] sm:$0xf]
    %v141 = vld [vmem:[#allocation5 + $0x64] sm:$0xf]
    %v142 = vld [vmem:[#allocation5 + $0x68] sm:$0xf]
    %v143 = vld [vmem:[#allocation5 + $0x6c] sm:$0xf]
    %v144 = vld [vmem:[#allocation5 + $0x70] sm:$0xf]
    %v145 = vld [vmem:[#allocation5 + $0x74] sm:$0xf]
    %v146 = vld [vmem:[#allocation5 + $0x78] sm:$0xf]
    %v147 = vld [vmem:[#allocation5 + $0x7c] sm:$0xf]
    %v148 = vld [vmem:[#allocation5 + $0x80] sm:$0xf]
    %v149 = vld [vmem:[#allocation5 + $0x84] sm:$0xf]
    %v150 = vld [vmem:[#allocation5 + $0x88] sm:$0xf]
    %v151 = vld [vmem:[#allocation5 + $0x8c] sm:$0xf]
    %v152 = vld [vmem:[#allocation5 + $0x90] sm:$0xf]
    %v153 = vld [vmem:[#allocation5 + $0x94] sm:$0xf]
    %v154 = vld [vmem:[#allocation5 + $0x98] sm:$0xf]
    %v155 = vld [vmem:[#allocation5 + $0x9c] sm:$0xf]
    %v156 = vld [vmem:[#allocation5 + $0xa0] sm:$0xf]
    %v157 = vld [vmem:[#allocation5 + $0xa4] sm:$0xf]
    %v158 = vld [vmem:[#allocation5 + $0xa8] sm:$0xf]
    %v159 = vld [vmem:[#allocation5 + $0xac] sm:$0xf]
    %v160 = vld [vmem:[#allocation5 + $0xb0] sm:$0xf]
    %v161 = vld [vmem:[#allocation5 + $0xb4] sm:$0xf]
    %v162 = vld [vmem:[#allocation5 + $0xb8] sm:$0xf]
    %v163 = vld [vmem:[#allocation5 + $0xbc] sm:$0xf]
    %v164 = vld [vmem:[#allocation5 + $0xc0] sm:$0xf]
    %v165 = vld [vmem:[#allocation5 + $0xc4] sm:$0xf]
    %v166 = vld [vmem:[#allocation5 + $0xc8] sm:$0xf]
    %v167 = vld [vmem:[#allocation5 + $0xcc] sm:$0xf]
    %v168 = vld [vmem:[#allocation5 + $0xd0] sm:$0xf]
    %v169 = vld [vmem:[#allocation5 + $0xd4] sm:$0xf]
    %v170 = vld [vmem:[#allocation5 + $0xd8] sm:$0xf]
    %v171 = vld [vmem:[#allocation5 + $0xdc] sm:$0xf]
    %v172 = vld [vmem:[#allocation5 + $0xe0] sm:$0xf]
    %v173 = vld [vmem:[#allocation5 + $0xe4] sm:$0xf]
    %v174 = vld [vmem:[#allocation5 + $0xe8] sm:$0xf]
    %v175 = vld [vmem:[#allocation5 + $0xec] sm:$0xf]
    %v176 = vld [vmem:[#allocation5 + $0xf0] sm:$0xf]
    %v177 = vld [vmem:[#allocation5 + $0xf4] sm:$0xf]
    %v178 = vld [vmem:[#allocation5 + $0xf8] sm:$0xf]
    %v179 = vld [vmem:[#allocation5 + $0xfc] sm:$0xf]
    %v180 = vld [vmem:[#allocation5 + $0x100] sm:$0xf]
    %v181 = vld [vmem:[#allocation5 + $0x104] sm:$0xf]
    %v182 = vld [vmem:[#allocation5 + $0x108] sm:$0xf]
    %v183 = vld [vmem:[#allocation5 + $0x10c] sm:$0xf]
    %v184 = vld [vmem:[#allocation5 + $0x110] sm:$0xf]
    %v185 = vld [vmem:[#allocation5 + $0x114] sm:$0xf]
    %v186 = vld [vmem:[#allocation5 + $0x118] sm:$0xf]
    %v187 = vld [vmem:[#allocation5 + $0x11c] sm:$0xf]
    %v188 = vld [vmem:[#allocation5 + $0x120] sm:$0xf]
    %v189 = vld [vmem:[#allocation5 + $0x124] sm:$0xf]
    %v190 = vld [vmem:[#allocation5 + $0x128] sm:$0xf]
    %v191 = vld [vmem:[#allocation5 + $0x12c] sm:$0xf]
    %v192 = vld [vmem:[#allocation5 + $0x130] sm:$0xf]
    %v193 = vld [vmem:[#allocation5 + $0x134] sm:$0xf]
    %v194 = vld [vmem:[#allocation5 + $0x138] sm:$0xf]
    %v195 = vld [vmem:[#allocation5 + $0x13c] sm:$0xf]
    %v196 = vld [vmem:[#allocation5 + $0x140] sm:$0xf]
    %v197 = vld [vmem:[#allocation5 + $0x144] sm:$0xf]
    %v198 = vld [vmem:[#allocation5 + $0x148] sm:$0xf]
    %v199 = vld [vmem:[#allocation5 + $0x14c] sm:$0xf]
    %v200 = vld [vmem:[#allocation5 + $0x150] sm:$0xf]
    %v201 = vld [vmem:[#allocation5 + $0x154] sm:$0xf]
    %v202 = vld [vmem:[#allocation5 + $0x158] sm:$0xf]
    %v203 = vld [vmem:[#allocation5 + $0x15c] sm:$0xf]
    %v204 = vld [vmem:[#allocation5 + $0x160] sm:$0xf]
    %v205 = vld [vmem:[#allocation5 + $0x164] sm:$0xf]
    %v206 = vld [vmem:[#allocation5 + $0x168] sm:$0xf]
    %v207 = vld [vmem:[#allocation5 + $0x16c] sm:$0xf]
    %v208 = vld [vmem:[#allocation5 + $0x170] sm:$0xf]
    %v209 = vld [vmem:[#allocation5 + $0x174] sm:$0xf]
    %v210 = vld [vmem:[#allocation5 + $0x178] sm:$0xf]
    %v211 = vld [vmem:[#allocation5 + $0x17c] sm:$0xf]
    %v212 = vld [vmem:[#allocation5 + $0x180] sm:$0xf]
    %v213 = vld [vmem:[#allocation5 + $0x184] sm:$0xf]
    %v214 = vld [vmem:[#allocation5 + $0x188] sm:$0xf]
    %v215 = vld [vmem:[#allocation5 + $0x18c] sm:$0xf]
    %v216 = vld [vmem:[#allocation5 + $0x190] sm:$0xf]
    %v217 = vld [vmem:[#allocation5 + $0x194] sm:$0xf]
    %v218 = vld [vmem:[#allocation5 + $0x198] sm:$0xf]
    %v219 = vld [vmem:[#allocation5 + $0x19c] sm:$0xf]
    %v220 = vld [vmem:[#allocation5 + $0x1a0] sm:$0xf]
    %v221 = vld [vmem:[#allocation5 + $0x1a4] sm:$0xf]
    %v222 = vld [vmem:[#allocation5 + $0x1a8] sm:$0xf]
    %v223 = vld [vmem:[#allocation5 + $0x1ac] sm:$0xf]
    %v224 = vld [vmem:[#allocation5 + $0x1b0] sm:$0xf]
    %v225 = vld [vmem:[#allocation5 + $0x1b4] sm:$0xf]
    %v226 = vld [vmem:[#allocation5 + $0x1b8] sm:$0xf]
    %v227 = vld [vmem:[#allocation5 + $0x1bc] sm:$0xf]
    %v228 = vld [vmem:[#allocation5 + $0x1c0] sm:$0xf]
    %v229 = vld [vmem:[#allocation5 + $0x1c4] sm:$0xf]
    %v230 = vld [vmem:[#allocation5 + $0x1c8] sm:$0xf]
    %v231 = vld [vmem:[#allocation5 + $0x1cc] sm:$0xf]
    %v232 = vld [vmem:[#allocation5 + $0x1d0] sm:$0xf]
    %v233 = vld [vmem:[#allocation5 + $0x1d4] sm:$0xf]
    %v234 = vld [vmem:[#allocation5 + $0x1d8] sm:$0xf]
    %v235 = vld [vmem:[#allocation5 + $0x1dc] sm:$0xf]
    %v236 = vld [vmem:[#allocation5 + $0x1e0] sm:$0xf]
    %v237 = vld [vmem:[#allocation5 + $0x1e4] sm:$0xf]
    %v238 = vld [vmem:[#allocation5 + $0x1e8] sm:$0xf]
    %v239 = vld [vmem:[#allocation5 + $0x1ec] sm:$0xf]
    %v240 = vld [vmem:[#allocation5 + $0x1f0] sm:$0xf]
    %v241 = vld [vmem:[#allocation5 + $0x1f4] sm:$0xf]
    %v242 = vld [vmem:[#allocation5 + $0x1f8] sm:$0xf]
    %v243 = vld [vmem:[#allocation5 + $0x1fc] sm:$0xf]
    %v244 = vld [vmem:[#allocation7] sm:$0xf]
    %v245 = vld [vmem:[#allocation7 + $0x4] sm:$0xf]
    %v246 = vld [vmem:[#allocation7 + $0x8] sm:$0xf]
    %v247 = vld [vmem:[#allocation7 + $0xc] sm:$0xf]
    %v248 = vld [vmem:[#allocation7 + $0x10] sm:$0xf]
    %v249 = vld [vmem:[#allocation7 + $0x14] sm:$0xf]
    %v250 = vld [vmem:[#allocation7 + $0x18] sm:$0xf]
    %v251 = vld [vmem:[#allocation7 + $0x1c] sm:$0xf]
    %v252 = vld [vmem:[#allocation7 + $0x20] sm:$0xf]
    %v253 = vld [vmem:[#allocation7 + $0x24] sm:$0xf]
    %v254 = vld [vmem:[#allocation7 + $0x28] sm:$0xf]
    %v255 = vld [vmem:[#allocation7 + $0x2c] sm:$0xf]
    %v256 = vld [vmem:[#allocation7 + $0x30] sm:$0xf]
    %v257 = vld [vmem:[#allocation7 + $0x34] sm:$0xf]
    %v258 = vld [vmem:[#allocation7 + $0x38] sm:$0xf]
    %v259 = vld [vmem:[#allocation7 + $0x3c] sm:$0xf]
    %v260 = vld [vmem:[%s2] sm:$0x1]
    %v261 = vld [vmem:[%s4] sm:$0x1]
    %v262 = vpack.c.bf16 %v108, %v100
    %v263 = vpack.c.bf16 %v109, %v101
    %v264 = vpack.c.bf16 %v110, %v102
    %v265 = vpack.c.bf16 %v111, %v103
    %v266 = vpack.c.bf16 %v112, %v104
    %v267 = vpack.c.bf16 %v113, %v105
    %v268 = vpack.c.bf16 %v114, %v106
    %v269 = vpack.c.bf16 %v115, %v107
    %v271 = vlaneseq
    %v272 = vshrl.u32 %v271, 7
    %v273 = vsub.s32 0, %v272
    %v274 = vrot.slane %v260, %v273
    %v404 = vunpack.c.l.b16 %v116
    %v405 = vunpack.c.l.b16 %v117
    %v406 = vunpack.c.l.b16 %v118
    %v407 = vunpack.c.l.b16 %v119
    %v408 = vunpack.c.l.b16 %v120
    %v409 = vunpack.c.l.b16 %v121
    %v410 = vunpack.c.l.b16 %v122
    %v411 = vunpack.c.l.b16 %v123
    %v412 = vunpack.c.l.b16 %v124
    %v413 = vunpack.c.l.b16 %v125
    %v414 = vunpack.c.l.b16 %v126
    %v415 = vunpack.c.l.b16 %v127
    %v416 = vunpack.c.l.b16 %v128
    %v417 = vunpack.c.l.b16 %v129
    %v418 = vunpack.c.l.b16 %v130
    %v419 = vunpack.c.l.b16 %v131
    %v420 = vunpack.c.l.b16 %v132
    %v421 = vunpack.c.l.b16 %v133
    %v422 = vunpack.c.l.b16 %v134
    %v423 = vunpack.c.l.b16 %v135
    %v424 = vunpack.c.l.b16 %v136
    %v425 = vunpack.c.l.b16 %v137
    %v426 = vunpack.c.l.b16 %v138
    %v427 = vunpack.c.l.b16 %v139
    %v428 = vunpack.c.l.b16 %v140
    %v429 = vunpack.c.l.b16 %v141
    %v430 = vunpack.c.l.b16 %v142
    %v431 = vunpack.c.l.b16 %v143
    %v432 = vunpack.c.l.b16 %v144
    %v433 = vunpack.c.l.b16 %v145
    %v434 = vunpack.c.l.b16 %v146
    %v435 = vunpack.c.l.b16 %v147
    %v436 = vunpack.c.l.b16 %v148
    %v437 = vunpack.c.l.b16 %v149
    %v438 = vunpack.c.l.b16 %v150
    %v439 = vunpack.c.l.b16 %v151
    %v440 = vunpack.c.l.b16 %v152
    %v441 = vunpack.c.l.b16 %v153
    %v442 = vunpack.c.l.b16 %v154
    %v443 = vunpack.c.l.b16 %v155
    %v444 = vunpack.c.l.b16 %v156
    %v445 = vunpack.c.l.b16 %v157
    %v446 = vunpack.c.l.b16 %v158
    %v447 = vunpack.c.l.b16 %v159
    %v448 = vunpack.c.l.b16 %v160
    %v449 = vunpack.c.l.b16 %v161
    %v450 = vunpack.c.l.b16 %v162
    %v451 = vunpack.c.l.b16 %v163
    %v452 = vunpack.c.l.b16 %v164
    %v453 = vunpack.c.l.b16 %v165
    %v454 = vunpack.c.l.b16 %v166
    %v455 = vunpack.c.l.b16 %v167
    %v456 = vunpack.c.l.b16 %v168
    %v457 = vunpack.c.l.b16 %v169
    %v458 = vunpack.c.l.b16 %v170
    %v459 = vunpack.c.l.b16 %v171
    %v460 = vunpack.c.l.b16 %v172
    %v461 = vunpack.c.l.b16 %v173
    %v462 = vunpack.c.l.b16 %v174
    %v463 = vunpack.c.l.b16 %v175
    %v464 = vunpack.c.l.b16 %v176
    %v465 = vunpack.c.l.b16 %v177
    %v466 = vunpack.c.l.b16 %v178
    %v467 = vunpack.c.l.b16 %v179
    %v468 = vunpack.c.l.b16 %v180
    %v469 = vunpack.c.l.b16 %v181
    %v470 = vunpack.c.l.b16 %v182
    %v471 = vunpack.c.l.b16 %v183
    %v472 = vunpack.c.l.b16 %v184
    %v473 = vunpack.c.l.b16 %v185
    %v474 = vunpack.c.l.b16 %v186
    %v475 = vunpack.c.l.b16 %v187
    %v476 = vunpack.c.l.b16 %v188
    %v477 = vunpack.c.l.b16 %v189
    %v478 = vunpack.c.l.b16 %v190
    %v479 = vunpack.c.l.b16 %v191
    %v480 = vunpack.c.l.b16 %v192
    %v481 = vunpack.c.l.b16 %v193
    %v482 = vunpack.c.l.b16 %v194
    %v483 = vunpack.c.l.b16 %v195
    %v484 = vunpack.c.l.b16 %v196
    %v485 = vunpack.c.l.b16 %v197
    %v486 = vunpack.c.l.b16 %v198
    %v487 = vunpack.c.l.b16 %v199
    %v488 = vunpack.c.l.b16 %v200
    %v489 = vunpack.c.l.b16 %v201
    %v490 = vunpack.c.l.b16 %v202
    %v491 = vunpack.c.l.b16 %v203
    %v492 = vunpack.c.l.b16 %v204
    %v493 = vunpack.c.l.b16 %v205
    %v494 = vunpack.c.l.b16 %v206
    %v495 = vunpack.c.l.b16 %v207
    %v496 = vunpack.c.l.b16 %v208
    %v497 = vunpack.c.l.b16 %v209
    %v498 = vunpack.c.l.b16 %v210
    %v499 = vunpack.c.l.b16 %v211
    %v500 = vunpack.c.l.b16 %v212
    %v501 = vunpack.c.l.b16 %v213
    %v502 = vunpack.c.l.b16 %v214
    %v503 = vunpack.c.l.b16 %v215
    %v504 = vunpack.c.l.b16 %v216
    %v505 = vunpack.c.l.b16 %v217
    %v506 = vunpack.c.l.b16 %v218
    %v507 = vunpack.c.l.b16 %v219
    %v508 = vunpack.c.l.b16 %v220
    %v509 = vunpack.c.l.b16 %v221
    %v510 = vunpack.c.l.b16 %v222
    %v511 = vunpack.c.l.b16 %v223
    %v512 = vunpack.c.l.b16 %v224
    %v513 = vunpack.c.l.b16 %v225
    %v514 = vunpack.c.l.b16 %v226
    %v515 = vunpack.c.l.b16 %v227
    %v516 = vunpack.c.l.b16 %v228
    %v517 = vunpack.c.l.b16 %v229
    %v518 = vunpack.c.l.b16 %v230
    %v519 = vunpack.c.l.b16 %v231
    %v520 = vunpack.c.l.b16 %v232
    %v521 = vunpack.c.l.b16 %v233
    %v522 = vunpack.c.l.b16 %v234
    %v523 = vunpack.c.l.b16 %v235
    %v524 = vunpack.c.l.b16 %v236
    %v525 = vunpack.c.l.b16 %v237
    %v526 = vunpack.c.l.b16 %v238
    %v527 = vunpack.c.l.b16 %v239
    %v528 = vunpack.c.l.b16 %v240
    %v529 = vunpack.c.l.b16 %v241
    %v530 = vunpack.c.l.b16 %v242
    %v531 = vunpack.c.l.b16 %v243
    %v532 = vpack.c.b16 %v405, %v404
    %v533 = vpack.c.b16 %v407, %v406
    %v534 = vpack.c.b16 %v409, %v408
    %v535 = vpack.c.b16 %v411, %v410
    %v536 = vpack.c.b16 %v413, %v412
    %v537 = vpack.c.b16 %v415, %v414
    %v538 = vpack.c.b16 %v417, %v416
    %v539 = vpack.c.b16 %v419, %v418
    %v540 = vpack.c.b16 %v421, %v420
    %v541 = vpack.c.b16 %v423, %v422
    %v542 = vpack.c.b16 %v425, %v424
    %v543 = vpack.c.b16 %v427, %v426
    %v544 = vpack.c.b16 %v429, %v428
    %v545 = vpack.c.b16 %v431, %v430
    %v546 = vpack.c.b16 %v433, %v432
    %v547 = vpack.c.b16 %v435, %v434
    %v548 = vpack.c.b16 %v437, %v436
    %v549 = vpack.c.b16 %v439, %v438
    %v550 = vpack.c.b16 %v441, %v440
    %v551 = vpack.c.b16 %v443, %v442
    %v552 = vpack.c.b16 %v445, %v444
    %v553 = vpack.c.b16 %v447, %v446
    %v554 = vpack.c.b16 %v449, %v448
    %v555 = vpack.c.b16 %v451, %v450
    %v556 = vpack.c.b16 %v453, %v452
    %v557 = vpack.c.b16 %v455, %v454
    %v558 = vpack.c.b16 %v457, %v456
    %v559 = vpack.c.b16 %v459, %v458
    %v560 = vpack.c.b16 %v461, %v460
    %v561 = vpack.c.b16 %v463, %v462
    %v562 = vpack.c.b16 %v465, %v464
    %v563 = vpack.c.b16 %v467, %v466
    %v564 = vpack.c.b16 %v469, %v468
    %v565 = vpack.c.b16 %v471, %v470
    %v566 = vpack.c.b16 %v473, %v472
    %v567 = vpack.c.b16 %v475, %v474
    %v568 = vpack.c.b16 %v477, %v476
    %v569 = vpack.c.b16 %v479, %v478
    %v570 = vpack.c.b16 %v481, %v480
    %v571 = vpack.c.b16 %v483, %v482
    %v572 = vpack.c.b16 %v485, %v484
    %v573 = vpack.c.b16 %v487, %v486
    %v574 = vpack.c.b16 %v489, %v488
    %v575 = vpack.c.b16 %v491, %v490
    %v576 = vpack.c.b16 %v493, %v492
    %v577 = vpack.c.b16 %v495, %v494
    %v578 = vpack.c.b16 %v497, %v496
    %v579 = vpack.c.b16 %v499, %v498
    %v580 = vpack.c.b16 %v501, %v500
    %v581 = vpack.c.b16 %v503, %v502
    %v582 = vpack.c.b16 %v505, %v504
    %v583 = vpack.c.b16 %v507, %v506
    %v584 = vpack.c.b16 %v509, %v508
    %v585 = vpack.c.b16 %v511, %v510
    %v586 = vpack.c.b16 %v513, %v512
    %v587 = vpack.c.b16 %v515, %v514
    %v588 = vpack.c.b16 %v517, %v516
    %v589 = vpack.c.b16 %v519, %v518
    %v590 = vpack.c.b16 %v521, %v520
    %v591 = vpack.c.b16 %v523, %v522
    %v592 = vpack.c.b16 %v525, %v524
    %v593 = vpack.c.b16 %v527, %v526
    %v594 = vpack.c.b16 %v529, %v528
    %v595 = vpack.c.b16 %v531, %v530
    %660 = vmatprep.subr.bf16.mxu0 0
    %661 = vmatpush1.bf16.msra.mxu0 %v532
    %662 = vmatprep.subr.bf16.mxu0 0
    %663 = vmatpush1.bf16.msra.mxu0 %v533
    %664 = vmatprep.subr.bf16.mxu0 0
    %665 = vmatpush1.bf16.msra.mxu0 %v534
    %666 = vmatprep.subr.bf16.mxu0 0
    %667 = vmatpush1.bf16.msra.mxu0 %v535
    %668 = vmatprep.subr.bf16.mxu0 0
    %669 = vmatpush1.bf16.msra.mxu0 %v536
    %670 = vmatprep.subr.bf16.mxu0 0
    %671 = vmatpush1.bf16.msra.mxu0 %v537
    %672 = vmatprep.subr.bf16.mxu0 0
    %673 = vmatpush1.bf16.msra.mxu0 %v538
    %674 = vmatprep.subr.bf16.mxu0 0
    %675 = vmatpush1.bf16.msra.mxu0 %v539
    %676 = vmatprep.subr.bf16.mxu0 0
    %677 = vmatpush1.bf16.msra.mxu0 %v540
    %678 = vmatprep.subr.bf16.mxu0 0
    %679 = vmatpush1.bf16.msra.mxu0 %v541
    %680 = vmatprep.subr.bf16.mxu0 0
    %681 = vmatpush1.bf16.msra.mxu0 %v542
    %682 = vmatprep.subr.bf16.mxu0 0
    %683 = vmatpush1.bf16.msra.mxu0 %v543
    %684 = vmatprep.subr.bf16.mxu0 0
    %685 = vmatpush1.bf16.msra.mxu0 %v544
    %686 = vmatprep.subr.bf16.mxu0 0
    %687 = vmatpush1.bf16.msra.mxu0 %v545
    %688 = vmatprep.subr.bf16.mxu0 0
    %689 = vmatpush1.bf16.msra.mxu0 %v546
    %690 = vmatprep.subr.bf16.mxu0 0
    %691 = vmatpush1.bf16.msra.mxu0 %v547
    %692 = vmatprep.mubr.bf16.mxu0 %v263
    %693 = vmatmul.mubr.bf16.gmra.mrb[0].mxu0 %v262
    %v694 = vpop.f32.mrb[0].mxu0
    %v695 = vadd.f32 %v274, %v694
    %v696 = vpop.f32.mrb[0].mxu0
    %v697 = vpop.f32.mrb[0].mxu0
    %v698 = vadd.f32 %v274, %v697
    %v699 = vpop.f32.mrb[0].mxu0
    %700 = vdwg.mxu0
    %701 = vmatprep.subr.bf16.mxu0 0
    %702 = vmatpush1.bf16.msra.mxu0 %v548
    %703 = vmatprep.subr.bf16.mxu0 0
    %704 = vmatpush1.bf16.msra.mxu0 %v549
    %705 = vmatprep.subr.bf16.mxu0 0
    %706 = vmatpush1.bf16.msra.mxu0 %v550
    %707 = vmatprep.subr.bf16.mxu0 0
    %708 = vmatpush1.bf16.msra.mxu0 %v551
    %709 = vmatprep.subr.bf16.mxu0 0
    %710 = vmatpush1.bf16.msra.mxu0 %v552
    %711 = vmatprep.subr.bf16.mxu0 0
    %712 = vmatpush1.bf16.msra.mxu0 %v553
    %713 = vmatprep.subr.bf16.mxu0 0
    %714 = vmatpush1.bf16.msra.mxu0 %v554
    %715 = vmatprep.subr.bf16.mxu0 0
    %716 = vmatpush1.bf16.msra.mxu0 %v555
    %717 = vmatprep.subr.bf16.mxu0 0
    %718 = vmatpush1.bf16.msra.mxu0 %v556
    %719 = vmatprep.subr.bf16.mxu0 0
    %720 = vmatpush1.bf16.msra.mxu0 %v557
    %721 = vmatprep.subr.bf16.mxu0 0
    %722 = vmatpush1.bf16.msra.mxu0 %v558
    %723 = vmatprep.subr.bf16.mxu0 0
    %724 = vmatpush1.bf16.msra.mxu0 %v559
    %725 = vmatprep.subr.bf16.mxu0 0
    %726 = vmatpush1.bf16.msra.mxu0 %v560
    %727 = vmatprep.subr.bf16.mxu0 0
    %728 = vmatpush1.bf16.msra.mxu0 %v561
    %729 = vmatprep.subr.bf16.mxu0 0
    %730 = vmatpush1.bf16.msra.mxu0 %v562
    %731 = vmatprep.subr.bf16.mxu0 0
    %732 = vmatpush1.bf16.msra.mxu0 %v563
    %733 = vmatprep.mubr.bf16.mxu0 %v265
    %734 = vmatmul.mubr.bf16.gmra.mrb[0].mxu0 %v264
    %v735 = vpop.f32.mrb[0].mxu0
    %v736 = vadd.f32 %v695, %v735
    %v737 = vpop.f32.mrb[0].mxu0
    %v738 = vpop.f32.mrb[0].mxu0
    %v739 = vadd.f32 %v698, %v738
    %v740 = vpop.f32.mrb[0].mxu0
    %741 = vdwg.mxu0
    %742 = vmatprep.subr.bf16.mxu0 0
    %743 = vmatpush1.bf16.msra.mxu0 %v564
    %744 = vmatprep.subr.bf16.mxu0 0
    %745 = vmatpush1.bf16.msra.mxu0 %v565
    %746 = vmatprep.subr.bf16.mxu0 0
    %747 = vmatpush1.bf16.msra.mxu0 %v566
    %748 = vmatprep.subr.bf16.mxu0 0
    %749 = vmatpush1.bf16.msra.mxu0 %v567
    %750 = vmatprep.subr.bf16.mxu0 0
    %751 = vmatpush1.bf16.msra.mxu0 %v568
    %752 = vmatprep.subr.bf16.mxu0 0
    %753 = vmatpush1.bf16.msra.mxu0 %v569
    %754 = vmatprep.subr.bf16.mxu0 0
    %755 = vmatpush1.bf16.msra.mxu0 %v570
    %756 = vmatprep.subr.bf16.mxu0 0
    %757 = vmatpush1.bf16.msra.mxu0 %v571
    %758 = vmatprep.subr.bf16.mxu0 0
    %759 = vmatpush1.bf16.msra.mxu0 %v572
    %760 = vmatprep.subr.bf16.mxu0 0
    %761 = vmatpush1.bf16.msra.mxu0 %v573
    %762 = vmatprep.subr.bf16.mxu0 0
    %763 = vmatpush1.bf16.msra.mxu0 %v574
    %764 = vmatprep.subr.bf16.mxu0 0
    %765 = vmatpush1.bf16.msra.mxu0 %v575
    %766 = vmatprep.subr.bf16.mxu0 0
    %767 = vmatpush1.bf16.msra.mxu0 %v576
    %768 = vmatprep.subr.bf16.mxu0 0
    %769 = vmatpush1.bf16.msra.mxu0 %v577
    %770 = vmatprep.subr.bf16.mxu0 0
    %771 = vmatpush1.bf16.msra.mxu0 %v578
    %772 = vmatprep.subr.bf16.mxu0 0
    %773 = vmatpush1.bf16.msra.mxu0 %v579
    %774 = vmatprep.mubr.bf16.mxu0 %v267
    %775 = vmatmul.mubr.bf16.gmra.mrb[0].mxu0 %v266
    %v776 = vpop.f32.mrb[0].mxu0
    %v777 = vadd.f32 %v736, %v776
    %v778 = vpop.f32.mrb[0].mxu0
    %v779 = vpop.f32.mrb[0].mxu0
    %v780 = vadd.f32 %v739, %v779
    %v781 = vpop.f32.mrb[0].mxu0
    %782 = vdwg.mxu0
    %783 = vmatprep.subr.bf16.mxu0 0
    %784 = vmatpush1.bf16.msra.mxu0 %v580
    %785 = vmatprep.subr.bf16.mxu0 0
    %786 = vmatpush1.bf16.msra.mxu0 %v581
    %787 = vmatprep.subr.bf16.mxu0 0
    %788 = vmatpush1.bf16.msra.mxu0 %v582
    %789 = vmatprep.subr.bf16.mxu0 0
    %790 = vmatpush1.bf16.msra.mxu0 %v583
    %791 = vmatprep.subr.bf16.mxu0 0
    %792 = vmatpush1.bf16.msra.mxu0 %v584
    %793 = vmatprep.subr.bf16.mxu0 0
    %794 = vmatpush1.bf16.msra.mxu0 %v585
    %795 = vmatprep.subr.bf16.mxu0 0
    %796 = vmatpush1.bf16.msra.mxu0 %v586
    %797 = vmatprep.subr.bf16.mxu0 0
    %798 = vmatpush1.bf16.msra.mxu0 %v587
    %799 = vmatprep.subr.bf16.mxu0 0
    %800 = vmatpush1.bf16.msra.mxu0 %v588
    %801 = vmatprep.subr.bf16.mxu0 0
    %802 = vmatpush1.bf16.msra.mxu0 %v589
    %803 = vmatprep.subr.bf16.mxu0 0
    %804 = vmatpush1.bf16.msra.mxu0 %v590
    %805 = vmatprep.subr.bf16.mxu0 0
    %806 = vmatpush1.bf16.msra.mxu0 %v591
    %807 = vmatprep.subr.bf16.mxu0 0
    %808 = vmatpush1.bf16.msra.mxu0 %v592
    %809 = vmatprep.subr.bf16.mxu0 0
    %810 = vmatpush1.bf16.msra.mxu0 %v593
    %811 = vmatprep.subr.bf16.mxu0 0
    %812 = vmatpush1.bf16.msra.mxu0 %v594
    %813 = vmatprep.subr.bf16.mxu0 0
    %814 = vmatpush1.bf16.msra.mxu0 %v595
    %815 = vmatprep.mubr.bf16.mxu0 %v269
    %816 = vmatmul.mubr.bf16.gmra.mrb[0].mxu0 %v268
    %v817 = vpop.f32.mrb[0].mxu0
    %v818 = vadd.f32 %v777, %v817
    %v819 = vpop.f32.mrb[0].mxu0
    %v820 = vpop.f32.mrb[0].mxu0
    %v821 = vadd.f32 %v780, %v820
    %v822 = vpop.f32.mrb[0].mxu0
    %823 = vdwg.mxu0
    %v824 = vmax.f32 %v818, 0.0
    %v825 = vmax.f32 %v821, 0.0
    %v826 = vpack.c.bf16 %v825, %v824
    %v828 = vlaneseq
    %v829 = vshrl.u32 %v828, 7
    %v830 = vsub.s32 0, %v829
    %v831 = vrot.slane %v261, %v830
    %v849 = vunpack.c.l.b16 %v244
    %v850 = vunpack.c.l.b16 %v245
    %v851 = vunpack.c.l.b16 %v246
    %v852 = vunpack.c.l.b16 %v247
    %v853 = vunpack.c.l.b16 %v248
    %v854 = vunpack.c.l.b16 %v249
    %v855 = vunpack.c.l.b16 %v250
    %v856 = vunpack.c.l.b16 %v251
    %v857 = vunpack.c.l.b16 %v252
    %v858 = vunpack.c.l.b16 %v253
    %v859 = vunpack.c.l.b16 %v254
    %v860 = vunpack.c.l.b16 %v255
    %v861 = vunpack.c.l.b16 %v256
    %v862 = vunpack.c.l.b16 %v257
    %v863 = vunpack.c.l.b16 %v258
    %v864 = vunpack.c.l.b16 %v259
    %v865 = vpack.c.b16 %v850, %v849
    %v866 = vpack.c.b16 %v852, %v851
    %v867 = vpack.c.b16 %v854, %v853
    %v868 = vpack.c.b16 %v856, %v855
    %v869 = vpack.c.b16 %v858, %v857
    %v870 = vpack.c.b16 %v860, %v859
    %v871 = vpack.c.b16 %v862, %v861
    %v872 = vpack.c.b16 %v864, %v863
    %881 = vmatprep.subr.bf16.mxu0 0
    %882 = vmatpush1.bf16.msra.mxu0 %v865
    %883 = vmatprep.subr.bf16.mxu0 0
    %884 = vmatpush1.bf16.msra.mxu0 %v866
    %885 = vmatprep.subr.bf16.mxu0 0
    %886 = vmatpush1.bf16.msra.mxu0 %v867
    %887 = vmatprep.subr.bf16.mxu0 0
    %888 = vmatpush1.bf16.msra.mxu0 %v868
    %889 = vmatprep.subr.bf16.mxu0 0
    %890 = vmatpush1.bf16.msra.mxu0 %v869
    %891 = vmatprep.subr.bf16.mxu0 0
    %892 = vmatpush1.bf16.msra.mxu0 %v870
    %893 = vmatprep.subr.bf16.mxu0 0
    %894 = vmatpush1.bf16.msra.mxu0 %v871
    %895 = vmatprep.subr.bf16.mxu0 0
    %896 = vmatpush1.bf16.msra.mxu0 %v872
    %897 = vmatprep.subr.bf16.mxu0 0
    %898 = vmatpush1.bf16.msra.mxu0 0
    %899 = vmatprep.subr.bf16.mxu0 0
    %900 = vmatpush1.bf16.msra.mxu0 0
    %901 = vmatprep.subr.bf16.mxu0 0
    %902 = vmatpush1.bf16.msra.mxu0 0
    %903 = vmatprep.subr.bf16.mxu0 0
    %904 = vmatpush1.bf16.msra.mxu0 0
    %905 = vmatprep.subr.bf16.mxu0 0
    %906 = vmatpush1.bf16.msra.mxu0 0
    %907 = vmatprep.subr.bf16.mxu0 0
    %908 = vmatpush1.bf16.msra.mxu0 0
    %909 = vmatprep.subr.bf16.mxu0 0
    %910 = vmatpush1.bf16.msra.mxu0 0
    %911 = vmatprep.subr.bf16.mxu0 0
    %912 = vmatpush1.bf16.msra.mxu0 0
    %913 = vmatprep.mubr.bf16.mxu0 0
    %914 = vmatmul.mubr.bf16.gmra.mrb[0].mxu0 %v826
    %v915 = vpop.f32.mrb[0].mxu0
    %v916 = vadd.f32 %v831, %v915
    %v917 = vpop.f32.mrb[0].mxu0
    %v918 = vpop.f32.mrb[0].mxu0
    %v919 = vadd.f32 %v831, %v918
    %v920 = vpop.f32.mrb[0].mxu0
    %921 = vdwg.mxu0
    %v922 = vlaneseq
    %v923 = vand.u32 %v922, 127
    %vm924 = vcmp.lt.s32.totalorder %v923, 10
    %v925 = vsel %vm924, %v916, -1e+30
    %v926 = vsel %vm924, %v919, -1e+30
    %927 = vmax.xlane.f32.xlu0 %v925
    %v928 = vpop.xlane.xlu0 %927
    %929 = vmax.xlane.f32.xlu0 %v926
    %v930 = vpop.xlane.xlu0 %929
    %v931 = vsub.f32 %v925, %v928
    %v932 = vsub.f32 %v926, %v930
    %v933 = vmul.f32 %v931, 1.442695
    %v934 = vpow.pop %v933
    %v935 = vmul.f32 %v932, 1.442695
    %v936 = vpow.pop %v935
    %937 = vadd.xlane.f32.xlu0 %v934
    %v938 = vpop.xlane.xlu0 %937
    %939 = vadd.xlane.f32.xlu0 %v936
    %v940 = vpop.xlane.xlu0 %939
    %v941 = vrcp.pop %v938
    %v942 = vmul.f32 %v934, %v941
    %v943 = vrcp.pop %v940
    %v944 = vmul.f32 %v936, %v943
    %v945 = vsel %vm924, %v942, 0.0
    %v946 = vsel %vm924, %v944, 0.0
    %947 = vst [vmem:[#allocation11] sm:$0xff] %v945
    %948 = vst [vmem:[#allocation11 + $0x8] sm:$0xff] %v946
    %vm949 = vcmp.ge.f32.partialorder %v916, 0.0
    %vm950 = vcmp.ge.f32.partialorder %v919, 0.0
    %v951 = vsel %vm949, 1e-06, -1e-06
    %v952 = vsel %vm950, 1e-06, -1e-06
    %v953 = vadd.f32 %v916, %v951
    %v954 = vadd.f32 %v919, %v952
    %v955 = vrcp.pop %v953
    %v956 = vmul.f32 %v945, %v955
    %v957 = vrcp.pop %v954
    %v958 = vmul.f32 %v946, %v957
    %v959 = vsel %vm924, %v956, 0.0
    %v960 = vsel %vm924, %v958, 0.0
    %v961 = vld [vmem:[#allocation10] sm:$0xff]
    %v962 = vld [vmem:[#allocation10 + $0x8] sm:$0xff]
    %v963 = vld [vmem:[#allocation10 + $0x10] sm:$0xff]
    %v964 = vld [vmem:[#allocation10 + $0x18] sm:$0xff]
    %v965 = vld [vmem:[#allocation10 + $0x20] sm:$0xff]
    %v966 = vld [vmem:[#allocation10 + $0x28] sm:$0xff]
    %v967 = vld [vmem:[#allocation10 + $0x30] sm:$0xff]
    %v968 = vld [vmem:[#allocation10 + $0x38] sm:$0xff]
    %v969 = vld [vmem:[#allocation10 + $0x40] sm:$0xff]
    %v970 = vld [vmem:[#allocation10 + $0x48] sm:$0xff]
    %v971 = vld [vmem:[#allocation10 + $0x50] sm:$0xff]
    %v972 = vld [vmem:[#allocation10 + $0x58] sm:$0xff]
    %v973 = vld [vmem:[#allocation10 + $0x60] sm:$0xff]
    %v974 = vld [vmem:[#allocation10 + $0x68] sm:$0xff]
    %v975 = vld [vmem:[#allocation10 + $0x70] sm:$0xff]
    %v976 = vld [vmem:[#allocation10 + $0x78] sm:$0xff]
    %977 = vmatprep.subr.mxu0 0.0
    %978 = vmatpush1.msra.mxu0 %v961
    %979 = vmatprep.subr.mxu0 0.0
    %980 = vmatpush1.msra.mxu0 %v962
    %981 = vmatprep.subr.mxu0 0.0
    %982 = vmatpush1.msra.mxu0 %v963
    %983 = vmatprep.subr.mxu0 0.0
    %984 = vmatpush1.msra.mxu0 %v964
    %985 = vmatprep.subr.mxu0 0.0
    %986 = vmatpush1.msra.mxu0 %v965
    %987 = vmatprep.subr.mxu0 0.0
    %988 = vmatpush1.msra.mxu0 %v966
    %989 = vmatprep.subr.mxu0 0.0
    %990 = vmatpush1.msra.mxu0 %v967
    %991 = vmatprep.subr.mxu0 0.0
    %992 = vmatpush1.msra.mxu0 %v968
    %993 = vmatprep.subr.mxu0 0.0
    %994 = vmatpush1.msra.mxu0 %v969
    %995 = vmatprep.subr.mxu0 0.0
    %996 = vmatpush1.msra.mxu0 %v970
    %997 = vmatprep.subr.mxu0 0.0
    %998 = vmatpush1.msra.mxu0 %v971
    %999 = vmatprep.subr.mxu0 0.0
    %1000 = vmatpush1.msra.mxu0 %v972
    %1001 = vmatprep.subr.mxu0 0.0
    %1002 = vmatpush1.msra.mxu0 %v973
    %1003 = vmatprep.subr.mxu0 0.0
    %1004 = vmatpush1.msra.mxu0 %v974
    %1005 = vmatprep.subr.mxu0 0.0
    %1006 = vmatpush1.msra.mxu0 %v975
    %1007 = vmatprep.subr.mxu0 0.0
    %1008 = vmatpush1.msra.mxu0 %v976
    %1009 = vmatprep.subr.mxu0 0.0
    %1010 = vmatpush1.msra.mxu0 0.0
    %1011 = vmatprep.subr.mxu0 0.0
    %1012 = vmatpush1.msra.mxu0 0.0
    %1013 = vmatprep.subr.mxu0 0.0
    %1014 = vmatpush1.msra.mxu0 0.0
    %1015 = vmatprep.subr.mxu0 0.0
    %1016 = vmatpush1.msra.mxu0 0.0
    %1017 = vmatprep.subr.mxu0 0.0
    %1018 = vmatpush1.msra.mxu0 0.0
    %1019 = vmatprep.subr.mxu0 0.0
    %1020 = vmatpush1.msra.mxu0 0.0
    %1021 = vmatprep.subr.mxu0 0.0
    %1022 = vmatpush1.msra.mxu0 0.0
    %1023 = vmatprep.subr.mxu0 0.0
    %1024 = vmatpush1.msra.mxu0 0.0
    %1025 = vmatprep.subr.mxu0 0.0
    %1026 = vmatpush1.msra.mxu0 0.0
    %1027 = vmatprep.subr.mxu0 0.0
    %1028 = vmatpush1.msra.mxu0 0.0
    %1029 = vmatprep.subr.mxu0 0.0
    %1030 = vmatpush1.msra.mxu0 0.0
    %1031 = vmatprep.subr.mxu0 0.0
    %1032 = vmatpush1.msra.mxu0 0.0
    %1033 = vmatprep.subr.mxu0 0.0
    %1034 = vmatpush1.msra.mxu0 0.0
    %1035 = vmatprep.subr.mxu0 0.0
    %1036 = vmatpush1.msra.mxu0 0.0
    %1037 = vmatprep.subr.mxu0 0.0
    %1038 = vmatpush1.msra.mxu0 0.0
    %1039 = vmatprep.subr.mxu0 0.0
    %1040 = vmatpush1.msra.mxu0 0.0
    %1041 = vmatprep.mubr.f32.mxu0 0.0
    %1042 = vmatmul.mubr.f32.gmra.mrb[0].mxu0 %v959
    %v1043 = vpop.f32.mrb[0].mxu0
    %v1044 = vadd.f32 0.0, %v1043
    %v1045 = vpop.f32.mrb[0].mxu0
    %1046 = vmatprep.mubr.f32.mxu0 0.0
    %1047 = vmatmul.mubr.f32.gmra.mrb[0].mxu0 %v960
    %v1048 = vpop.f32.mrb[0].mxu0
    %v1049 = vadd.f32 0.0, %v1048
    %v1050 = vpop.f32.mrb[0].mxu0
    %1051 = vdwg.mxu0
    %v1052 = vmul.f32 %v824, %v1044
    %v1053 = vmul.f32 %v825, %v1049
    %1054 = vst [vmem:[#allocation12] sm:$0xff] %v1052
    %1055 = vst [vmem:[#allocation12 + $0x8] sm:$0xff] %v1053
    %vm1056 = vcmp.ge.f32.partialorder %v818, 0.0
    %vm1057 = vcmp.ge.f32.partialorder %v821, 0.0
    %v1058 = vsel %vm1056, 1e-06, -1e-06
    %v1059 = vsel %vm1057, 1e-06, -1e-06
    %v1060 = vadd.f32 %v818, %v1058
    %v1061 = vadd.f32 %v821, %v1059
    %v1062 = vrcp.pop %v1060
    %v1063 = vmul.f32 %v1052, %v1062
    %v1064 = vrcp.pop %v1061
    %v1065 = vmul.f32 %v1053, %v1064
    %v1066 = vld [vmem:[#allocation8] sm:$0xff]
    %v1067 = vld [vmem:[#allocation8 + $0x8] sm:$0xff]
    %v1068 = vld [vmem:[#allocation8 + $0x10] sm:$0xff]
    %v1069 = vld [vmem:[#allocation8 + $0x18] sm:$0xff]
    %v1070 = vld [vmem:[#allocation8 + $0x20] sm:$0xff]
    %v1071 = vld [vmem:[#allocation8 + $0x28] sm:$0xff]
    %v1072 = vld [vmem:[#allocation8 + $0x30] sm:$0xff]
    %v1073 = vld [vmem:[#allocation8 + $0x38] sm:$0xff]
    %v1074 = vld [vmem:[#allocation8 + $0x40] sm:$0xff]
    %v1075 = vld [vmem:[#allocation8 + $0x48] sm:$0xff]
    %v1076 = vld [vmem:[#allocation8 + $0x50] sm:$0xff]
    %v1077 = vld [vmem:[#allocation8 + $0x58] sm:$0xff]
    %v1078 = vld [vmem:[#allocation8 + $0x60] sm:$0xff]
    %v1079 = vld [vmem:[#allocation8 + $0x68] sm:$0xff]
    %v1080 = vld [vmem:[#allocation8 + $0x70] sm:$0xff]
    %v1081 = vld [vmem:[#allocation8 + $0x78] sm:$0xff]
    %v1082 = vld [vmem:[#allocation8 + $0x80] sm:$0xff]
    %v1083 = vld [vmem:[#allocation8 + $0x88] sm:$0xff]
    %v1084 = vld [vmem:[#allocation8 + $0x90] sm:$0xff]
    %v1085 = vld [vmem:[#allocation8 + $0x98] sm:$0xff]
    %v1086 = vld [vmem:[#allocation8 + $0xa0] sm:$0xff]
    %v1087 = vld [vmem:[#allocation8 + $0xa8] sm:$0xff]
    %v1088 = vld [vmem:[#allocation8 + $0xb0] sm:$0xff]
    %v1089 = vld [vmem:[#allocation8 + $0xb8] sm:$0xff]
    %v1090 = vld [vmem:[#allocation8 + $0xc0] sm:$0xff]
    %v1091 = vld [vmem:[#allocation8 + $0xc8] sm:$0xff]
    %v1092 = vld [vmem:[#allocation8 + $0xd0] sm:$0xff]
    %v1093 = vld [vmem:[#allocation8 + $0xd8] sm:$0xff]
    %v1094 = vld [vmem:[#allocation8 + $0xe0] sm:$0xff]
    %v1095 = vld [vmem:[#allocation8 + $0xe8] sm:$0xff]
    %v1096 = vld [vmem:[#allocation8 + $0xf0] sm:$0xff]
    %v1097 = vld [vmem:[#allocation8 + $0xf8] sm:$0xff]
    %v1098 = vld [vmem:[#allocation8 + $0x100] sm:$0xff]
    %v1099 = vld [vmem:[#allocation8 + $0x108] sm:$0xff]
    %v1100 = vld [vmem:[#allocation8 + $0x110] sm:$0xff]
    %v1101 = vld [vmem:[#allocation8 + $0x118] sm:$0xff]
    %v1102 = vld [vmem:[#allocation8 + $0x120] sm:$0xff]
    %v1103 = vld [vmem:[#allocation8 + $0x128] sm:$0xff]
    %v1104 = vld [vmem:[#allocation8 + $0x130] sm:$0xff]
    %v1105 = vld [vmem:[#allocation8 + $0x138] sm:$0xff]
    %v1106 = vld [vmem:[#allocation8 + $0x140] sm:$0xff]
    %v1107 = vld [vmem:[#allocation8 + $0x148] sm:$0xff]
    %v1108 = vld [vmem:[#allocation8 + $0x150] sm:$0xff]
    %v1109 = vld [vmem:[#allocation8 + $0x158] sm:$0xff]
    %v1110 = vld [vmem:[#allocation8 + $0x160] sm:$0xff]
    %v1111 = vld [vmem:[#allocation8 + $0x168] sm:$0xff]
    %v1112 = vld [vmem:[#allocation8 + $0x170] sm:$0xff]
    %v1113 = vld [vmem:[#allocation8 + $0x178] sm:$0xff]
    %v1114 = vld [vmem:[#allocation8 + $0x180] sm:$0xff]
    %v1115 = vld [vmem:[#allocation8 + $0x188] sm:$0xff]
    %v1116 = vld [vmem:[#allocation8 + $0x190] sm:$0xff]
    %v1117 = vld [vmem:[#allocation8 + $0x198] sm:$0xff]
    %v1118 = vld [vmem:[#allocation8 + $0x1a0] sm:$0xff]
    %v1119 = vld [vmem:[#allocation8 + $0x1a8] sm:$0xff]
    %v1120 = vld [vmem:[#allocation8 + $0x1b0] sm:$0xff]
    %v1121 = vld [vmem:[#allocation8 + $0x1b8] sm:$0xff]
    %v1122 = vld [vmem:[#allocation8 + $0x1c0] sm:$0xff]
    %v1123 = vld [vmem:[#allocation8 + $0x1c8] sm:$0xff]
    %v1124 = vld [vmem:[#allocation8 + $0x1d0] sm:$0xff]
    %v1125 = vld [vmem:[#allocation8 + $0x1d8] sm:$0xff]
    %v1126 = vld [vmem:[#allocation8 + $0x1e0] sm:$0xff]
    %v1127 = vld [vmem:[#allocation8 + $0x1e8] sm:$0xff]
    %v1128 = vld [vmem:[#allocation8 + $0x1f0] sm:$0xff]
    %v1129 = vld [vmem:[#allocation8 + $0x1f8] sm:$0xff]
    %v1130 = vld [vmem:[#allocation8 + $0x200] sm:$0xff]
    %v1131 = vld [vmem:[#allocation8 + $0x208] sm:$0xff]
    %v1132 = vld [vmem:[#allocation8 + $0x210] sm:$0xff]
    %v1133 = vld [vmem:[#allocation8 + $0x218] sm:$0xff]
    %v1134 = vld [vmem:[#allocation8 + $0x220] sm:$0xff]
    %v1135 = vld [vmem:[#allocation8 + $0x228] sm:$0xff]
    %v1136 = vld [vmem:[#allocation8 + $0x230] sm:$0xff]
    %v1137 = vld [vmem:[#allocation8 + $0x238] sm:$0xff]
    %v1138 = vld [vmem:[#allocation8 + $0x240] sm:$0xff]
    %v1139 = vld [vmem:[#allocation8 + $0x248] sm:$0xff]
    %v1140 = vld [vmem:[#allocation8 + $0x250] sm:$0xff]
    %v1141 = vld [vmem:[#allocation8 + $0x258] sm:$0xff]
    %v1142 = vld [vmem:[#allocation8 + $0x260] sm:$0xff]
    %v1143 = vld [vmem:[#allocation8 + $0x268] sm:$0xff]
    %v1144 = vld [vmem:[#allocation8 + $0x270] sm:$0xff]
    %v1145 = vld [vmem:[#allocation8 + $0x278] sm:$0xff]
    %v1146 = vld [vmem:[#allocation8 + $0x280] sm:$0xff]
    %v1147 = vld [vmem:[#allocation8 + $0x288] sm:$0xff]
    %v1148 = vld [vmem:[#allocation8 + $0x290] sm:$0xff]
    %v1149 = vld [vmem:[#allocation8 + $0x298] sm:$0xff]
    %v1150 = vld [vmem:[#allocation8 + $0x2a0] sm:$0xff]
    %v1151 = vld [vmem:[#allocation8 + $0x2a8] sm:$0xff]
    %v1152 = vld [vmem:[#allocation8 + $0x2b0] sm:$0xff]
    %v1153 = vld [vmem:[#allocation8 + $0x2b8] sm:$0xff]
    %v1154 = vld [vmem:[#allocation8 + $0x2c0] sm:$0xff]
    %v1155 = vld [vmem:[#allocation8 + $0x2c8] sm:$0xff]
    %v1156 = vld [vmem:[#allocation8 + $0x2d0] sm:$0xff]
    %v1157 = vld [vmem:[#allocation8 + $0x2d8] sm:$0xff]
    %v1158 = vld [vmem:[#allocation8 + $0x2e0] sm:$0xff]
    %v1159 = vld [vmem:[#allocation8 + $0x2e8] sm:$0xff]
    %v1160 = vld [vmem:[#allocation8 + $0x2f0] sm:$0xff]
    %v1161 = vld [vmem:[#allocation8 + $0x2f8] sm:$0xff]
    %v1162 = vld [vmem:[#allocation8 + $0x300] sm:$0xff]
    %v1163 = vld [vmem:[#allocation8 + $0x308] sm:$0xff]
    %v1164 = vld [vmem:[#allocation8 + $0x310] sm:$0xff]
    %v1165 = vld [vmem:[#allocation8 + $0x318] sm:$0xff]
    %v1166 = vld [vmem:[#allocation8 + $0x320] sm:$0xff]
    %v1167 = vld [vmem:[#allocation8 + $0x328] sm:$0xff]
    %v1168 = vld [vmem:[#allocation8 + $0x330] sm:$0xff]
    %v1169 = vld [vmem:[#allocation8 + $0x338] sm:$0xff]
    %v1170 = vld [vmem:[#allocation8 + $0x340] sm:$0xff]
    %v1171 = vld [vmem:[#allocation8 + $0x348] sm:$0xff]
    %v1172 = vld [vmem:[#allocation8 + $0x350] sm:$0xff]
    %v1173 = vld [vmem:[#allocation8 + $0x358] sm:$0xff]
    %v1174 = vld [vmem:[#allocation8 + $0x360] sm:$0xff]
    %v1175 = vld [vmem:[#allocation8 + $0x368] sm:$0xff]
    %v1176 = vld [vmem:[#allocation8 + $0x370] sm:$0xff]
    %v1177 = vld [vmem:[#allocation8 + $0x378] sm:$0xff]
    %v1178 = vld [vmem:[#allocation8 + $0x380] sm:$0xff]
    %v1179 = vld [vmem:[#allocation8 + $0x388] sm:$0xff]
    %v1180 = vld [vmem:[#allocation8 + $0x390] sm:$0xff]
    %v1181 = vld [vmem:[#allocation8 + $0x398] sm:$0xff]
    %v1182 = vld [vmem:[#allocation8 + $0x3a0] sm:$0xff]
    %v1183 = vld [vmem:[#allocation8 + $0x3a8] sm:$0xff]
    %v1184 = vld [vmem:[#allocation8 + $0x3b0] sm:$0xff]
    %v1185 = vld [vmem:[#allocation8 + $0x3b8] sm:$0xff]
    %v1186 = vld [vmem:[#allocation8 + $0x3c0] sm:$0xff]
    %v1187 = vld [vmem:[#allocation8 + $0x3c8] sm:$0xff]
    %v1188 = vld [vmem:[#allocation8 + $0x3d0] sm:$0xff]
    %v1189 = vld [vmem:[#allocation8 + $0x3d8] sm:$0xff]
    %v1190 = vld [vmem:[#allocation8 + $0x3e0] sm:$0xff]
    %v1191 = vld [vmem:[#allocation8 + $0x3e8] sm:$0xff]
    %v1192 = vld [vmem:[#allocation8 + $0x3f0] sm:$0xff]
    %v1193 = vld [vmem:[#allocation8 + $0x3f8] sm:$0xff]
    %1194 = vmatprep.subr.mxu0 %v1067
    %1195 = vmatpush1.msra.mxu0 %v1066
    %1196 = vmatprep.subr.mxu0 %v1075
    %1197 = vmatpush1.msra.mxu0 %v1074
    %1198 = vmatprep.subr.mxu0 %v1083
    %1199 = vmatpush1.msra.mxu0 %v1082
    %1200 = vmatprep.subr.mxu0 %v1091
    %1201 = vmatpush1.msra.mxu0 %v1090
    %1202 = vmatprep.subr.mxu0 %v1099
    %1203 = vmatpush1.msra.mxu0 %v1098
    %1204 = vmatprep.subr.mxu0 %v1107
    %1205 = vmatpush1.msra.mxu0 %v1106
    %1206 = vmatprep.subr.mxu0 %v1115
    %1207 = vmatpush1.msra.mxu0 %v1114
    %1208 = vmatprep.subr.mxu0 %v1123
    %1209 = vmatpush1.msra.mxu0 %v1122
    %1210 = vmatprep.subr.mxu0 %v1131
    %1211 = vmatpush1.msra.mxu0 %v1130
    %1212 = vmatprep.subr.mxu0 %v1139
    %1213 = vmatpush1.msra.mxu0 %v1138
    %1214 = vmatprep.subr.mxu0 %v1147
    %1215 = vmatpush1.msra.mxu0 %v1146
    %1216 = vmatprep.subr.mxu0 %v1155
    %1217 = vmatpush1.msra.mxu0 %v1154
    %1218 = vmatprep.subr.mxu0 %v1163
    %1219 = vmatpush1.msra.mxu0 %v1162
    %1220 = vmatprep.subr.mxu0 %v1171
    %1221 = vmatpush1.msra.mxu0 %v1170
    %1222 = vmatprep.subr.mxu0 %v1179
    %1223 = vmatpush1.msra.mxu0 %v1178
    %1224 = vmatprep.subr.mxu0 %v1187
    %1225 = vmatpush1.msra.mxu0 %v1186
    %1226 = vmatprep.subr.mxu0 0.0
    %1227 = vmatpush1.msra.mxu0 0.0
    %1228 = vmatprep.subr.mxu0 0.0
    %1229 = vmatpush1.msra.mxu0 0.0
    %1230 = vmatprep.subr.mxu0 0.0
    %1231 = vmatpush1.msra.mxu0 0.0
    %1232 = vmatprep.subr.mxu0 0.0
    %1233 = vmatpush1.msra.mxu0 0.0
    %1234 = vmatprep.subr.mxu0 0.0
    %1235 = vmatpush1.msra.mxu0 0.0
    %1236 = vmatprep.subr.mxu0 0.0
    %1237 = vmatpush1.msra.mxu0 0.0
    %1238 = vmatprep.subr.mxu0 0.0
    %1239 = vmatpush1.msra.mxu0 0.0
    %1240 = vmatprep.subr.mxu0 0.0
    %1241 = vmatpush1.msra.mxu0 0.0
    %1242 = vmatprep.subr.mxu0 0.0
    %1243 = vmatpush1.msra.mxu0 0.0
    %1244 = vmatprep.subr.mxu0 0.0
    %1245 = vmatpush1.msra.mxu0 0.0
    %1246 = vmatprep.subr.mxu0 0.0
    %1247 = vmatpush1.msra.mxu0 0.0
    %1248 = vmatprep.subr.mxu0 0.0
    %1249 = vmatpush1.msra.mxu0 0.0
    %1250 = vmatprep.subr.mxu0 0.0
    %1251 = vmatpush1.msra.mxu0 0.0
    %1252 = vmatprep.subr.mxu0 0.0
    %1253 = vmatpush1.msra.mxu0 0.0
    %1254 = vmatprep.subr.mxu0 0.0
    %1255 = vmatpush1.msra.mxu0 0.0
    %1256 = vmatprep.subr.mxu0 0.0
    %1257 = vmatpush1.msra.mxu0 0.0
    %1258 = vmatprep.mubr.f32.mxu0 0.0
    %1259 = vmatmul.mubr.f32.gmra.mrb[0].mxu0 %v1063
    %v1260 = vpop.f32.mrb[0].mxu0
    %v1261 = vadd.f32 0.0, %v1260
    %v1262 = vpop.f32.mrb[0].mxu0
    %v1263 = vadd.f32 0.0, %v1262
    %1264 = vmatprep.mubr.f32.mxu0 0.0
    %1265 = vmatmul.mubr.f32.gmra.mrb[0].mxu0 %v1065
    %v1266 = vpop.f32.mrb[0].mxu0
    %v1267 = vadd.f32 0.0, %v1266
    %v1268 = vpop.f32.mrb[0].mxu0
    %v1269 = vadd.f32 0.0, %v1268
    %1270 = vdwg.mxu0
    %1271 = vmatprep.subr.mxu0 %v1069
    %1272 = vmatpush1.msra.mxu0 %v1068
    %1273 = vmatprep.subr.mxu0 %v1077
    %1274 = vmatpush1.msra.mxu0 %v1076
    %1275 = vmatprep.subr.mxu0 %v1085
    %1276 = vmatpush1.msra.mxu0 %v1084
    %1277 = vmatprep.subr.mxu0 %v1093
    %1278 = vmatpush1.msra.mxu0 %v1092
    %1279 = vmatprep.subr.mxu0 %v1101
    %1280 = vmatpush1.msra.mxu0 %v1100
    %1281 = vmatprep.subr.mxu0 %v1109
    %1282 = vmatpush1.msra.mxu0 %v1108
    %1283 = vmatprep.subr.mxu0 %v1117
    %1284 = vmatpush1.msra.mxu0 %v1116
    %1285 = vmatprep.subr.mxu0 %v1125
    %1286 = vmatpush1.msra.mxu0 %v1124
    %1287 = vmatprep.subr.mxu0 %v1133
    %1288 = vmatpush1.msra.mxu0 %v1132
    %1289 = vmatprep.subr.mxu0 %v1141
    %1290 = vmatpush1.msra.mxu0 %v1140
    %1291 = vmatprep.subr.mxu0 %v1149
    %1292 = vmatpush1.msra.mxu0 %v1148
    %1293 = vmatprep.subr.mxu0 %v1157
    %1294 = vmatpush1.msra.mxu0 %v1156
    %1295 = vmatprep.subr.mxu0 %v1165
    %1296 = vmatpush1.msra.mxu0 %v1164
    %1297 = vmatprep.subr.mxu0 %v1173
    %1298 = vmatpush1.msra.mxu0 %v1172
    %1299 = vmatprep.subr.mxu0 %v1181
    %1300 = vmatpush1.msra.mxu0 %v1180
    %1301 = vmatprep.subr.mxu0 %v1189
    %1302 = vmatpush1.msra.mxu0 %v1188
    %1303 = vmatprep.subr.mxu0 0.0
    %1304 = vmatpush1.msra.mxu0 0.0
    %1305 = vmatprep.subr.mxu0 0.0
    %1306 = vmatpush1.msra.mxu0 0.0
    %1307 = vmatprep.subr.mxu0 0.0
    %1308 = vmatpush1.msra.mxu0 0.0
    %1309 = vmatprep.subr.mxu0 0.0
    %1310 = vmatpush1.msra.mxu0 0.0
    %1311 = vmatprep.subr.mxu0 0.0
    %1312 = vmatpush1.msra.mxu0 0.0
    %1313 = vmatprep.subr.mxu0 0.0
    %1314 = vmatpush1.msra.mxu0 0.0
    %1315 = vmatprep.subr.mxu0 0.0
    %1316 = vmatpush1.msra.mxu0 0.0
    %1317 = vmatprep.subr.mxu0 0.0
    %1318 = vmatpush1.msra.mxu0 0.0
    %1319 = vmatprep.subr.mxu0 0.0
    %1320 = vmatpush1.msra.mxu0 0.0
    %1321 = vmatprep.subr.mxu0 0.0
    %1322 = vmatpush1.msra.mxu0 0.0
    %1323 = vmatprep.subr.mxu0 0.0
    %1324 = vmatpush1.msra.mxu0 0.0
    %1325 = vmatprep.subr.mxu0 0.0
    %1326 = vmatpush1.msra.mxu0 0.0
    %1327 = vmatprep.subr.mxu0 0.0
    %1328 = vmatpush1.msra.mxu0 0.0
    %1329 = vmatprep.subr.mxu0 0.0
    %1330 = vmatpush1.msra.mxu0 0.0
    %1331 = vmatprep.subr.mxu0 0.0
    %1332 = vmatpush1.msra.mxu0 0.0
    %1333 = vmatprep.subr.mxu0 0.0
    %1334 = vmatpush1.msra.mxu0 0.0
    %1335 = vmatprep.mubr.f32.mxu0 0.0
    %1336 = vmatmul.mubr.f32.gmra.mrb[0].mxu0 %v1063
    %v1337 = vpop.f32.mrb[0].mxu0
    %v1338 = vadd.f32 0.0, %v1337
    %v1339 = vpop.f32.mrb[0].mxu0
    %v1340 = vadd.f32 0.0, %v1339
    %1341 = vmatprep.mubr.f32.mxu0 0.0
    %1342 = vmatmul.mubr.f32.gmra.mrb[0].mxu0 %v1065
    %v1343 = vpop.f32.mrb[0].mxu0
    %v1344 = vadd.f32 0.0, %v1343
    %v1345 = vpop.f32.mrb[0].mxu0
    %v1346 = vadd.f32 0.0, %v1345
    %1347 = vdwg.mxu0
    %1348 = vmatprep.subr.mxu0 %v1071
    %1349 = vmatpush1.msra.mxu0 %v1070
    %1350 = vmatprep.subr.mxu0 %v1079
    %1351 = vmatpush1.msra.mxu0 %v1078
    %1352 = vmatprep.subr.mxu0 %v1087
    %1353 = vmatpush1.msra.mxu0 %v1086
    %1354 = vmatprep.subr.mxu0 %v1095
    %1355 = vmatpush1.msra.mxu0 %v1094
    %1356 = vmatprep.subr.mxu0 %v1103
    %1357 = vmatpush1.msra.mxu0 %v1102
    %1358 = vmatprep.subr.mxu0 %v1111
    %1359 = vmatpush1.msra.mxu0 %v1110
    %1360 = vmatprep.subr.mxu0 %v1119
    %1361 = vmatpush1.msra.mxu0 %v1118
    %1362 = vmatprep.subr.mxu0 %v1127
    %1363 = vmatpush1.msra.mxu0 %v1126
    %1364 = vmatprep.subr.mxu0 %v1135
    %1365 = vmatpush1.msra.mxu0 %v1134
    %1366 = vmatprep.subr.mxu0 %v1143
    %1367 = vmatpush1.msra.mxu0 %v1142
    %1368 = vmatprep.subr.mxu0 %v1151
    %1369 = vmatpush1.msra.mxu0 %v1150
    %1370 = vmatprep.subr.mxu0 %v1159
    %1371 = vmatpush1.msra.mxu0 %v1158
    %1372 = vmatprep.subr.mxu0 %v1167
    %1373 = vmatpush1.msra.mxu0 %v1166
    %1374 = vmatprep.subr.mxu0 %v1175
    %1375 = vmatpush1.msra.mxu0 %v1174
    %1376 = vmatprep.subr.mxu0 %v1183
    %1377 = vmatpush1.msra.mxu0 %v1182
    %1378 = vmatprep.subr.mxu0 %v1191
    %1379 = vmatpush1.msra.mxu0 %v1190
    %1380 = vmatprep.subr.mxu0 0.0
    %1381 = vmatpush1.msra.mxu0 0.0
    %1382 = vmatprep.subr.mxu0 0.0
    %1383 = vmatpush1.msra.mxu0 0.0
    %1384 = vmatprep.subr.mxu0 0.0
    %1385 = vmatpush1.msra.mxu0 0.0
    %1386 = vmatprep.subr.mxu0 0.0
    %1387 = vmatpush1.msra.mxu0 0.0
    %1388 = vmatprep.subr.mxu0 0.0
    %1389 = vmatpush1.msra.mxu0 0.0
    %1390 = vmatprep.subr.mxu0 0.0
    %1391 = vmatpush1.msra.mxu0 0.0
    %1392 = vmatprep.subr.mxu0 0.0
    %1393 = vmatpush1.msra.mxu0 0.0
    %1394 = vmatprep.subr.mxu0 0.0
    %1395 = vmatpush1.msra.mxu0 0.0
    %1396 = vmatprep.subr.mxu0 0.0
    %1397 = vmatpush1.msra.mxu0 0.0
    %1398 = vmatprep.subr.mxu0 0.0
    %1399 = vmatpush1.msra.mxu0 0.0
    %1400 = vmatprep.subr.mxu0 0.0
    %1401 = vmatpush1.msra.mxu0 0.0
    %1402 = vmatprep.subr.mxu0 0.0
    %1403 = vmatpush1.msra.mxu0 0.0
    %1404 = vmatprep.subr.mxu0 0.0
    %1405 = vmatpush1.msra.mxu0 0.0
    %1406 = vmatprep.subr.mxu0 0.0
    %1407 = vmatpush1.msra.mxu0 0.0
    %1408 = vmatprep.subr.mxu0 0.0
    %1409 = vmatpush1.msra.mxu0 0.0
    %1410 = vmatprep.subr.mxu0 0.0
    %1411 = vmatpush1.msra.mxu0 0.0
    %1412 = vmatprep.mubr.f32.mxu0 0.0
    %1413 = vmatmul.mubr.f32.gmra.mrb[0].mxu0 %v1063
    %v1414 = vpop.f32.mrb[0].mxu0
    %v1415 = vadd.f32 0.0, %v1414
    %v1416 = vpop.f32.mrb[0].mxu0
    %v1417 = vadd.f32 0.0, %v1416
    %1418 = vmatprep.mubr.f32.mxu0 0.0
    %1419 = vmatmul.mubr.f32.gmra.mrb[0].mxu0 %v1065
    %v1420 = vpop.f32.mrb[0].mxu0
    %v1421 = vadd.f32 0.0, %v1420
    %v1422 = vpop.f32.mrb[0].mxu0
    %v1423 = vadd.f32 0.0, %v1422
    %1424 = vdwg.mxu0
    %1425 = vmatprep.subr.mxu0 %v1073
    %1426 = vmatpush1.msra.mxu0 %v1072
    %1427 = vmatprep.subr.mxu0 %v1081
    %1428 = vmatpush1.msra.mxu0 %v1080
    %1429 = vmatprep.subr.mxu0 %v1089
    %1430 = vmatpush1.msra.mxu0 %v1088
    %1431 = vmatprep.subr.mxu0 %v1097
    %1432 = vmatpush1.msra.mxu0 %v1096
    %1433 = vmatprep.subr.mxu0 %v1105
    %1434 = vmatpush1.msra.mxu0 %v1104
    %1435 = vmatprep.subr.mxu0 %v1113
    %1436 = vmatpush1.msra.mxu0 %v1112
    %1437 = vmatprep.subr.mxu0 %v1121
    %1438 = vmatpush1.msra.mxu0 %v1120
    %1439 = vmatprep.subr.mxu0 %v1129
    %1440 = vmatpush1.msra.mxu0 %v1128
    %1441 = vmatprep.subr.mxu0 %v1137
    %1442 = vmatpush1.msra.mxu0 %v1136
    %1443 = vmatprep.subr.mxu0 %v1145
    %1444 = vmatpush1.msra.mxu0 %v1144
    %1445 = vmatprep.subr.mxu0 %v1153
    %1446 = vmatpush1.msra.mxu0 %v1152
    %1447 = vmatprep.subr.mxu0 %v1161
    %1448 = vmatpush1.msra.mxu0 %v1160
    %1449 = vmatprep.subr.mxu0 %v1169
    %1450 = vmatpush1.msra.mxu0 %v1168
    %1451 = vmatprep.subr.mxu0 %v1177
    %1452 = vmatpush1.msra.mxu0 %v1176
    %1453 = vmatprep.subr.mxu0 %v1185
    %1454 = vmatpush1.msra.mxu0 %v1184
    %1455 = vmatprep.subr.mxu0 %v1193
    %1456 = vmatpush1.msra.mxu0 %v1192
    %1457 = vmatprep.subr.mxu0 0.0
    %1458 = vmatpush1.msra.mxu0 0.0
    %1459 = vmatprep.subr.mxu0 0.0
    %1460 = vmatpush1.msra.mxu0 0.0
    %1461 = vmatprep.subr.mxu0 0.0
    %1462 = vmatpush1.msra.mxu0 0.0
    %1463 = vmatprep.subr.mxu0 0.0
    %1464 = vmatpush1.msra.mxu0 0.0
    %1465 = vmatprep.subr.mxu0 0.0
    %1466 = vmatpush1.msra.mxu0 0.0
    %1467 = vmatprep.subr.mxu0 0.0
    %1468 = vmatpush1.msra.mxu0 0.0
    %1469 = vmatprep.subr.mxu0 0.0
    %1470 = vmatpush1.msra.mxu0 0.0
    %1471 = vmatprep.subr.mxu0 0.0
    %1472 = vmatpush1.msra.mxu0 0.0
    %1473 = vmatprep.subr.mxu0 0.0
    %1474 = vmatpush1.msra.mxu0 0.0
    %1475 = vmatprep.subr.mxu0 0.0
    %1476 = vmatpush1.msra.mxu0 0.0
    %1477 = vmatprep.subr.mxu0 0.0
    %1478 = vmatpush1.msra.mxu0 0.0
    %1479 = vmatprep.subr.mxu0 0.0
    %1480 = vmatpush1.msra.mxu0 0.0
    %1481 = vmatprep.subr.mxu0 0.0
    %1482 = vmatpush1.msra.mxu0 0.0
    %1483 = vmatprep.subr.mxu0 0.0
    %1484 = vmatpush1.msra.mxu0 0.0
    %1485 = vmatprep.subr.mxu0 0.0
    %1486 = vmatpush1.msra.mxu0 0.0
    %1487 = vmatprep.subr.mxu0 0.0
    %1488 = vmatpush1.msra.mxu0 0.0
    %1489 = vmatprep.mubr.f32.mxu0 0.0
    %1490 = vmatmul.mubr.f32.gmra.mrb[0].mxu0 %v1063
    %v1491 = vpop.f32.mrb[0].mxu0
    %v1492 = vadd.f32 0.0, %v1491
    %v1493 = vpop.f32.mrb[0].mxu0
    %v1494 = vadd.f32 0.0, %v1493
    %1495 = vmatprep.mubr.f32.mxu0 0.0
    %1496 = vmatmul.mubr.f32.gmra.mrb[0].mxu0 %v1065
    %v1497 = vpop.f32.mrb[0].mxu0
    %v1498 = vadd.f32 0.0, %v1497
    %v1499 = vpop.f32.mrb[0].mxu0
    %v1500 = vadd.f32 0.0, %v1499
    %1501 = vdwg.mxu0
    %v1502 = vmul.f32 %v100, %v1261
    %v1503 = vmul.f32 %v101, %v1263
    %v1504 = vmul.f32 %v102, %v1338
    %v1505 = vmul.f32 %v103, %v1340
    %v1506 = vmul.f32 %v104, %v1415
    %v1507 = vmul.f32 %v105, %v1417
    %v1508 = vmul.f32 %v106, %v1492
    %v1509 = vmul.f32 %v107, %v1494
    %v1510 = vmul.f32 %v108, %v1267
    %v1511 = vmul.f32 %v109, %v1269
    %v1512 = vmul.f32 %v110, %v1344
    %v1513 = vmul.f32 %v111, %v1346
    %v1514 = vmul.f32 %v112, %v1421
    %v1515 = vmul.f32 %v113, %v1423
    %v1516 = vmul.f32 %v114, %v1498
    %v1517 = vmul.f32 %v115, %v1500
    %1518 = vst [vmem:[#allocation14] sm:$0xff] %v1502
    %1519 = vst [vmem:[#allocation14 + $0x8] sm:$0xff] %v1503
    %1520 = vst [vmem:[#allocation14 + $0x10] sm:$0xff] %v1504
    %1521 = vst [vmem:[#allocation14 + $0x18] sm:$0xff] %v1505
    %1522 = vst [vmem:[#allocation14 + $0x20] sm:$0xff] %v1506
    %1523 = vst [vmem:[#allocation14 + $0x28] sm:$0xff] %v1507
    %1524 = vst [vmem:[#allocation14 + $0x30] sm:$0xff] %v1508
    %1525 = vst [vmem:[#allocation14 + $0x38] sm:$0xff] %v1509
    %1526 = vst [vmem:[#allocation14 + $0x40] sm:$0xff] %v1510
    %1527 = vst [vmem:[#allocation14 + $0x48] sm:$0xff] %v1511
    %1528 = vst [vmem:[#allocation14 + $0x50] sm:$0xff] %v1512
    %1529 = vst [vmem:[#allocation14 + $0x58] sm:$0xff] %v1513
    %1530 = vst [vmem:[#allocation14 + $0x60] sm:$0xff] %v1514
    %1531 = vst [vmem:[#allocation14 + $0x68] sm:$0xff] %v1515
    %1532 = vst [vmem:[#allocation14 + $0x70] sm:$0xff] %v1516
    %1533 = vst [vmem:[#allocation14 + $0x78] sm:$0xff] %v1517
    // Predicated region
    $region50: #{tpu_custom_call.1} parent=1 // pred_check
      _
    $region51: #{tpu_custom_call.1} parent=1 // pred_check_branch
      %1535 = sbr.rel (0) target = $region53
    $region52: #{tpu_custom_call.1} parent=1 // pred_region
      %s1537 = ssub.s32 256, 256
      %1538 = vsyncadd [#allocation4], %s1537
      %s1539 = sshll.u32 [#allocation11], 4
      %s1540 = int_to_ptr.vmem [resolvable:$true] %s1539
      %1545 = dma.vmem_to_hbm [thread:$0]  %s1540, 256, %s7, [#allocation4], 128, 128, 8
    $region53: #{tpu_custom_call.1} parent=1 // pred_fallthru
      _
    // Predicated region
    $region54: #{tpu_custom_call.1} parent=1 // pred_check
      _
    $region55: #{tpu_custom_call.1} parent=1 // pred_check_branch
      %1547 = sbr.rel (0) target = $region57
    $region56: #{tpu_custom_call.1} parent=1 // pred_region
      %s1549 = ssub.s32 256, 256
      %1550 = vsyncadd [#allocation13], %s1549
      %s1551 = sshll.u32 [#allocation12], 4
      %s1552 = int_to_ptr.vmem [resolvable:$true] %s1551
      %1557 = dma.vmem_to_hbm [thread:$0]  %s1552, 256, %s8, [#allocation13], 128, 128, 8
    $region57: #{tpu_custom_call.1} parent=1 // pred_fallthru
      _
    // Predicated region
    $region58: #{tpu_custom_call.1} parent=1 // pred_check
      _
    $region59: #{tpu_custom_call.1} parent=1 // pred_check_branch
      %1559 = sbr.rel (0) target = $region61
    $region60: #{tpu_custom_call.1} parent=1 // pred_region
      %s1561 = ssub.s32 2048, 2048
      %1562 = vsyncadd [#allocation13], %s1561
      %s1563 = sshll.u32 [#allocation14], 4
      %s1564 = int_to_ptr.vmem [resolvable:$true] %s1563
      %1569 = dma.vmem_to_hbm [thread:$0]  %s1564, 2048, %s9, [#allocation13], 1024, 1024, 64
    $region61: #{tpu_custom_call.1} parent=1 // pred_fallthru
      _
    // Predicated region
    $region62: #{tpu_custom_call.1} parent=1 // pred_check
      _
    $region63: #{tpu_custom_call.1} parent=1 // pred_check_branch
      %1571 = sbr.rel (0) target = $region65
    $region64: #{tpu_custom_call.1} parent=1 // pred_region
      %1572 = dma.done [#allocation4], 256
    $region65: #{tpu_custom_call.1} parent=1 // pred_fallthru
      _
    // Predicated region
    $region66: #{tpu_custom_call.1} parent=1 // pred_check
      _
    $region67: #{tpu_custom_call.1} parent=1 // pred_check_branch
      %1574 = sbr.rel (0) target = $region69
    $region68: #{tpu_custom_call.1} parent=1 // pred_region
      %1575 = dma.done [#allocation13], 256
    $region69: #{tpu_custom_call.1} parent=1 // pred_fallthru
      _
    // Predicated region
    $region70: #{tpu_custom_call.1} parent=1 // pred_check
      _
    $region71: #{tpu_custom_call.1} parent=1 // pred_check_branch
      %1577 = sbr.rel (0) target = $region73
    $region72: #{tpu_custom_call.1} parent=1 // pred_region
      %1578 = dma.done [#allocation13], 2048
    $region73: #{tpu_custom_call.1} parent=1 // pred_fallthru
      _
    %1579 = vsyncpa [#allocation3], 1
    %1580 = vsyncpa [#allocation6], 1
    %1581 = vsyncpa [#allocation9], 1
    %1582 = vsyncpa [#allocation4], 1
    %1583 = vsyncpa [#allocation13], 1

</llo_original>
